<compile_context>
chip_gen: v7x
topology: tpu7x:2x2x1
jax: 0.10.0
libtpu: 0.0.40
codegen_flags: <defaults>
</compile_context>

<pallas_src>
import jax
import jax.numpy as jnp
from jax.experimental import pallas as pl
from jax.experimental.pallas import tpu as pltpu


def _relu(t):
    return jnp.maximum(t, 0.0)


def _make_mlp_skip_kernel(num_hidden_linears: int):
    """Kernel ref order:
       x, w_enc, b_enc, [w_i, b_i] * num_hidden_linears, w_dec_h, w_dec_e, b_dec, out
    """

    def kernel(*refs):
        x_ref = refs[0]
        w_enc_ref, b_enc_ref = refs[1], refs[2]
        hidden = refs[3:3 + 2 * num_hidden_linears]
        w_dec_h_ref = refs[3 + 2 * num_hidden_linears]
        w_dec_e_ref = refs[4 + 2 * num_hidden_linears]
        b_dec_ref = refs[5 + 2 * num_hidden_linears]
        o_ref = refs[-1]

        x = x_ref[...]                                               # (TB, in) bf16
        encoded = (
            jnp.dot(x, w_enc_ref[...], preferred_element_type=jnp.float32)
            + b_enc_ref[...]
        )                                                            # (TB, h0) f32

        h = encoded
        # self.layers: [act, Linear] * (n-1) + [act]   (statically unrolled)
        for i in range(num_hidden_linears):
            h_act = _relu(h).astype(jnp.bfloat16)
            h = (
                jnp.dot(h_act, hidden[2 * i][...],
                        preferred_element_type=jnp.float32)
                + hidden[2 * i + 1][...]
            )
        # Trailing activation inside self.layers + the extra self.activation(x)
        # in forward().  ReLU is idempotent, so a single pass suffices.
        h = _relu(h).astype(jnp.bfloat16)                            # (TB, h_last) bf16

        # Decoder on cat([act(h), encoded]) via pre-split weight (no concat).
        out = (
            jnp.dot(h, w_dec_h_ref[...], preferred_element_type=jnp.float32)
            + jnp.dot(encoded.astype(jnp.bfloat16), w_dec_e_ref[...],
                      preferred_element_type=jnp.float32)
            + b_dec_ref[...]
        )
        o_ref[...] = out.astype(o_ref.dtype)

    return kernel


def _choose_batch_tile(B: int, block_b) -> int:
    """Pick a batch tile: large, multiple of 8, and (when possible) an even
    grid extent >= 2 so the parallel axis shards over both v7x TensorCores."""
    if block_b is not None:
        TB = min(block_b, B)
    elif B % 2 == 0 and (B // 2) % 8 == 0:
        TB = B // 2          # grid extent == 2: even, and big tiles for v5e/v6e
    else:
        TB = B               # single-step grid fallback
    assert B % TB == 0, "batch must be divisible by the batch tile"
    return TB


def _vmem_limit_bytes() -> int:
    """~75% of physical VMEM, generation-aware, with a safe fallback."""
    try:
        cap = pltpu.get_tpu_info().vmem_capacity_bytes
        return int(cap * 0.75)
    except Exception:
        return 48 * 1024 * 1024


def mlp_skip_forward(x, w_enc, b_enc, hidden_ws, hidden_bs, w_dec, b_dec,
                     layer_sizes, *, block_b=None):
    """x: (B, in_features) f32.  Weights pre-transposed to (in, out); biases (1, out) f32."""
    B, in_features = x.shape
    out_features = w_dec.shape[1]
    h_last = layer_sizes[-1]
    num_hidden_linears = len(hidden_ws)

    # bf16 MXU inputs (weights + x); biases stay f32 (added post f32-accumulation).
    bf = jnp.bfloat16
    x_bf = x.astype(bf)
    w_enc_bf = w_enc.astype(bf)
    w_dec_h = w_dec[:h_last, :].astype(bf)   # rows multiplying act(h)
    w_dec_e = w_dec[h_last:, :].astype(bf)   # rows multiplying encoded
    hidden_flat = []
    for w, b in zip(hidden_ws, hidden_bs):
        hidden_flat.append(w.astype(bf))
        hidden_flat.append(b)

    TB = _choose_batch_tile(B, block_b)
    kernel = _make_mlp_skip_kernel(num_hidden_linears)
    args = (x_bf, w_enc_bf, b_enc, *hidden_flat, w_dec_h, w_dec_e, b_dec)

    # Cost estimate: all matmul FLOPs + total HBM bytes touched.
    dot_dims = [(in_features, layer_sizes[0])]
    for i in range(len(layer_sizes) - 1):
        dot_dims.append((layer_sizes[i], layer_sizes[i + 1]))
    dot_dims.append((h_last, out_features))
    dot_dims.append((layer_sizes[0], out_features))
    flops = 2 * B * sum(k * n for k, n in dot_dims)
    param_bytes = sum(int(a.size) * a.dtype.itemsize
                      for a in (w_enc_bf, b_enc, *hidden_flat, w_dec_h, w_dec_e, b_dec))
    bytes_accessed = int(x_bf.size) * 2 + param_bytes + B * out_features * 4
    cost = pl.CostEstimate(flops=flops, transcendentals=0,
                           bytes_accessed=bytes_accessed)

    def build(single_buffer_params: bool):
        param_kwargs = {}
        if single_buffer_params:
            # Constant index_map -> the second pipeline buffer would never be
            # used; single-buffer to halve resident-weight VMEM (v7x: 64 MiB).
            param_kwargs = dict(pipeline_mode=pl.Buffered(1))

        const2 = lambda b: (0, 0)   # resident parameter blocks (no re-DMA across steps)
        in_specs = [pl.BlockSpec((TB, in_features), lambda b: (b, 0))]   # x batch tile
        in_specs.append(pl.BlockSpec(w_enc_bf.shape, const2, **param_kwargs))
        in_specs.append(pl.BlockSpec(b_enc.shape, const2, **param_kwargs))
        for p in hidden_flat:
            in_specs.append(pl.BlockSpec(p.shape, const2, **param_kwargs))
        in_specs.append(pl.BlockSpec(w_dec_h.shape, const2, **param_kwargs))
        in_specs.append(pl.BlockSpec(w_dec_e.shape, const2, **param_kwargs))
        in_specs.append(pl.BlockSpec(b_dec.shape, const2, **param_kwargs))

        return pl.pallas_call(
            kernel,
            out_shape=jax.ShapeDtypeStruct((B, out_features), jnp.float32),
            grid_spec=pltpu.PrefetchScalarGridSpec(
                num_scalar_prefetch=0,
                grid=(B // TB,),
                in_specs=in_specs,
                out_specs=pl.BlockSpec((TB, out_features), lambda b: (b, 0)),
            ),
            compiler_params=pltpu.CompilerParams(
                dimension_semantics=("parallel",),
                vmem_limit_bytes=_vmem_limit_bytes(),
            ),
            cost_estimate=cost,
        )

    try:
        return build(single_buffer_params=True)(*args)
    except Exception:
        # Fallback if Buffered(1) is rejected by this jax/Mosaic version.
        return build(single_buffer_params=False)(*args)


def ref_forward_f32(x, w_enc, b_enc, hidden_ws, hidden_bs, w_dec, b_dec, layer_sizes):
    """Pure-JAX f32 reference mirroring the PyTorch forward literally (with concat)."""
    hp = jax.lax.Precision.HIGHEST
    encoded = jnp.dot(x, w_enc, precision=hp) + b_enc
    h = encoded
    n = len(layer_sizes)
    for i in range(n):
        h = _relu(h)
        if i + 1 < n:
            h = jnp.dot(h, hidden_ws[i], precision=hp) + hidden_bs[i]
    cat = jnp.concatenate([_relu(h), encoded], axis=1)
    return jnp.dot(cat, w_dec, precision=hp) + b_dec


def ref_forward_bf16(x, w_enc, b_enc, hidden_ws, hidden_bs, w_dec, b_dec, layer_sizes):
    """Pure-JAX reference mirroring the kernel's bf16-input / f32-accumulate numerics."""
    bf = jnp.bfloat16
    encoded = jnp.dot(x.astype(bf), w_enc.astype(bf),
                      preferred_element_type=jnp.float32) + b_enc
    h = encoded
    for i in range(len(layer_sizes) - 1):
        h = jnp.dot(_relu(h).astype(bf), hidden_ws[i].astype(bf),
                    preferred_element_type=jnp.float32) + hidden_bs[i]
    h_act = _relu(h).astype(bf)
    h_last = layer_sizes[-1]
    return (jnp.dot(h_act, w_dec[:h_last].astype(bf), preferred_element_type=jnp.float32)
            + jnp.dot(encoded.astype(bf), w_dec[h_last:].astype(bf),
                      preferred_element_type=jnp.float32)
            + b_dec)


if __name__ == "__main__":
    # Small but TPU-friendly shapes (all feature dims multiples of 128 -> lane-dense).
    B = 256
    in_features = 128
    layer_sizes = [256, 128]
    out_features = 128
    scale = 0.05

    key = jax.random.PRNGKey(0)
    ks = jax.random.split(key, 8)

    x = jax.random.normal(ks[0], (B, in_features), dtype=jnp.float32)

    # Parameters stored pre-transposed as (in, out); biases as (1, out).
    w_enc = scale * jax.random.normal(ks[1], (in_features, layer_sizes[0]), dtype=jnp.float32)
    b_enc = scale * jax.random.normal(ks[2], (1, layer_sizes[0]), dtype=jnp.float32)

    hidden_ws, hidden_bs = [], []
    kidx = 3
    for i in range(len(layer_sizes) - 1):
        hidden_ws.append(scale * jax.random.normal(
            ks[kidx], (layer_sizes[i], layer_sizes[i + 1]), dtype=jnp.float32)); kidx += 1
        hidden_bs.append(scale * jax.random.normal(
            ks[kidx], (1, layer_sizes[i + 1]), dtype=jnp.float32)); kidx += 1

    w_dec = scale * jax.random.normal(
        ks[kidx], (layer_sizes[-1] + layer_sizes[0], out_features), dtype=jnp.float32); kidx += 1
    b_dec = scale * jax.random.normal(ks[kidx], (1, out_features), dtype=jnp.float32)

    out = mlp_skip_forward(x, w_enc, b_enc, hidden_ws, hidden_bs, w_dec, b_dec, layer_sizes)
    out = jax.block_until_ready(out)
    assert out.shape == (B, out_features)

    # Tight check against a reference using the same bf16-input numerics as the kernel.
    ref_bf = ref_forward_bf16(x, w_enc, b_enc, hidden_ws, hidden_bs, w_dec, b_dec, layer_sizes)
    err_bf = float(jnp.max(jnp.abs(out - ref_bf)))
    assert jnp.allclose(out, ref_bf, atol=2e-3, rtol=2e-3), \
        f"mismatch vs bf16 reference, max err {err_bf}"

    # Loose check against the full-f32 (Precision.HIGHEST) PyTorch-literal reference;
    # tolerance relaxed because the kernel uses bf16 MXU inputs.
    ref_f32 = ref_forward_f32(x, w_enc, b_enc, hidden_ws, hidden_bs, w_dec, b_dec, layer_sizes)
    err_f32 = float(jnp.max(jnp.abs(out - ref_f32)))
    assert jnp.allclose(out, ref_f32, atol=3e-2, rtol=3e-2), \
        f"mismatch vs f32 reference, max err {err_f32}"

    print("KERNEL_OK")
</pallas_src>

<mosaic_0001>
module attributes {stable_mosaic.version = 11 : i64} {
  func.func @kernel(%arg0: i32, %arg1: memref<128x128xbf16, #tpu.memory_space<vmem>>, %arg2: memref<128x256xbf16, #tpu.memory_space<vmem>>, %arg3: memref<1x256xf32, #tpu.memory_space<vmem>>, %arg4: memref<256x128xbf16, #tpu.memory_space<vmem>>, %arg5: memref<1x128xf32, #tpu.memory_space<vmem>>, %arg6: memref<128x128xbf16, #tpu.memory_space<vmem>>, %arg7: memref<256x128xbf16, #tpu.memory_space<vmem>>, %arg8: memref<1x128xf32, #tpu.memory_space<vmem>>, %arg9: memref<128x128xf32, #tpu.memory_space<vmem>>) attributes {dimension_semantics = [#tpu.dimension_semantics<parallel>], iteration_bounds = array<i64: 2>, scalar_prefetch = 0 : i64, scratch_operands = 0 : i64, tpu.core_type = #tpu.core_type<tc>, window_params = [{transform_indices = @transform_0, window_bounds = array<i64: 128, 128>}, {pipeline_mode = #tpu.pipeline_mode<synchronous>, transform_indices = @transform_1, window_bounds = array<i64: 128, 256>}, {pipeline_mode = #tpu.pipeline_mode<synchronous>, transform_indices = @transform_2, window_bounds = array<i64: 1, 256>}, {pipeline_mode = #tpu.pipeline_mode<synchronous>, transform_indices = @transform_3, window_bounds = array<i64: 256, 128>}, {pipeline_mode = #tpu.pipeline_mode<synchronous>, transform_indices = @transform_4, window_bounds = array<i64: 1, 128>}, {pipeline_mode = #tpu.pipeline_mode<synchronous>, transform_indices = @transform_5, window_bounds = array<i64: 128, 128>}, {pipeline_mode = #tpu.pipeline_mode<synchronous>, transform_indices = @transform_6, window_bounds = array<i64: 256, 128>}, {pipeline_mode = #tpu.pipeline_mode<synchronous>, transform_indices = @transform_7, window_bounds = array<i64: 1, 128>}, {transform_indices = @transform_8, window_bounds = array<i64: 128, 128>}]} {
    %c0 = arith.constant 0 : index
    %c0_0 = arith.constant 0 : index
    %0 = vector.load %arg1[%c0, %c0_0] : memref<128x128xbf16, #tpu.memory_space<vmem>>, vector<128x128xbf16>
    %c0_1 = arith.constant 0 : index
    %c0_2 = arith.constant 0 : index
    %1 = vector.load %arg2[%c0_1, %c0_2] : memref<128x256xbf16, #tpu.memory_space<vmem>>, vector<128x256xbf16>
    %cst = arith.constant dense<0.000000e+00> : vector<128x256xf32>
    %2 = tpu.matmul %0, %1, %cst {dimension_numbers = #tpu.dot_dimension_numbers<[1], [0], [0], [1], [0, 0, 1, 1], [], []>} : vector<128x128xbf16>, vector<128x256xbf16>, vector<128x256xf32> -> vector<128x256xf32>
    %c0_3 = arith.constant 0 : index
    %c0_4 = arith.constant 0 : index
    %3 = vector.load %arg3[%c0_3, %c0_4] : memref<1x256xf32, #tpu.memory_space<vmem>>, vector<1x256xf32>
    %4 = vector.broadcast %3 : vector<1x256xf32> to vector<128x256xf32>
    %5 = arith.addf %2, %4 : vector<128x256xf32>
    %cst_5 = arith.constant 0.000000e+00 : f32
    %6 = vector.broadcast %cst_5 : f32 to vector<128x256xf32>
    %7 = arith.maximumf %5, %6 : vector<128x256xf32>
    %8 = arith.truncf %7 : vector<128x256xf32> to vector<128x256xbf16>
    %c0_6 = arith.constant 0 : index
    %c0_7 = arith.constant 0 : index
    %9 = vector.load %arg4[%c0_6, %c0_7] : memref<256x128xbf16, #tpu.memory_space<vmem>>, vector<256x128xbf16>
    %cst_8 = arith.constant dense<0.000000e+00> : vector<128x128xf32>
    %10 = tpu.matmul %8, %9, %cst_8 {dimension_numbers = #tpu.dot_dimension_numbers<[1], [0], [0], [1], [0, 0, 1, 1], [], []>} : vector<128x256xbf16>, vector<256x128xbf16>, vector<128x128xf32> -> vector<128x128xf32>
    %c0_9 = arith.constant 0 : index
    %c0_10 = arith.constant 0 : index
    %11 = vector.load %arg5[%c0_9, %c0_10] : memref<1x128xf32, #tpu.memory_space<vmem>>, vector<1x128xf32>
    %12 = vector.broadcast %11 : vector<1x128xf32> to vector<128x128xf32>
    %13 = arith.addf %10, %12 : vector<128x128xf32>
    %cst_11 = arith.constant 0.000000e+00 : f32
    %14 = vector.broadcast %cst_11 : f32 to vector<128x128xf32>
    %15 = arith.maximumf %13, %14 : vector<128x128xf32>
    %16 = arith.truncf %15 : vector<128x128xf32> to vector<128x128xbf16>
    %c0_12 = arith.constant 0 : index
    %c0_13 = arith.constant 0 : index
    %17 = vector.load %arg6[%c0_12, %c0_13] : memref<128x128xbf16, #tpu.memory_space<vmem>>, vector<128x128xbf16>
    %cst_14 = arith.constant dense<0.000000e+00> : vector<128x128xf32>
    %18 = tpu.matmul %16, %17, %cst_14 {dimension_numbers = #tpu.dot_dimension_numbers<[1], [0], [0], [1], [0, 0, 1, 1], [], []>} : vector<128x128xbf16>, vector<128x128xbf16>, vector<128x128xf32> -> vector<128x128xf32>
    %19 = arith.truncf %5 : vector<128x256xf32> to vector<128x256xbf16>
    %c0_15 = arith.constant 0 : index
    %c0_16 = arith.constant 0 : index
    %20 = vector.load %arg7[%c0_15, %c0_16] : memref<256x128xbf16, #tpu.memory_space<vmem>>, vector<256x128xbf16>
    %cst_17 = arith.constant dense<0.000000e+00> : vector<128x128xf32>
    %21 = tpu.matmul %19, %20, %cst_17 {dimension_numbers = #tpu.dot_dimension_numbers<[1], [0], [0], [1], [0, 0, 1, 1], [], []>} : vector<128x256xbf16>, vector<256x128xbf16>, vector<128x128xf32> -> vector<128x128xf32>
    %22 = arith.addf %18, %21 : vector<128x128xf32>
    %c0_18 = arith.constant 0 : index
    %c0_19 = arith.constant 0 : index
    %23 = vector.load %arg8[%c0_18, %c0_19] : memref<1x128xf32, #tpu.memory_space<vmem>>, vector<1x128xf32>
    %24 = vector.broadcast %23 : vector<1x128xf32> to vector<128x128xf32>
    %25 = arith.addf %22, %24 : vector<128x128xf32>
    %c0_20 = arith.constant 0 : index
    %c0_21 = arith.constant 0 : index
    %26 = vector.load %arg9[%c0_20, %c0_21] : memref<128x128xf32, #tpu.memory_space<vmem>>, vector<128x128xf32>
    tpu.vector_store %arg9[%c0_20, %c0_21], %25 {strides = array<i32>} : memref<128x128xf32, #tpu.memory_space<vmem>>, vector<128x128xf32>,
    return
  }
  func.func @transform_0(%arg0: i32) -> (i32, i32) {
    %c0_i32 = arith.constant 0 : i32
    %c0_i32_0 = arith.constant 0 : i32
    return %arg0, %c0_i32 : i32, i32
  }
  func.func @transform_1(%arg0: i32) -> (i32, i32) {
    %c0_i32 = arith.constant 0 : i32
    %c0_i32_0 = arith.constant 0 : i32
    %c0_i32_1 = arith.constant 0 : i32
    return %c0_i32, %c0_i32_0 : i32, i32
  }
  func.func @transform_2(%arg0: i32) -> (i32, i32) {
    %c0_i32 = arith.constant 0 : i32
    %c0_i32_0 = arith.constant 0 : i32
    %c0_i32_1 = arith.constant 0 : i32
    return %c0_i32, %c0_i32_0 : i32, i32
  }
  func.func @transform_3(%arg0: i32) -> (i32, i32) {
    %c0_i32 = arith.constant 0 : i32
    %c0_i32_0 = arith.constant 0 : i32
    %c0_i32_1 = arith.constant 0 : i32
    return %c0_i32, %c0_i32_0 : i32, i32
  }
  func.func @transform_4(%arg0: i32) -> (i32, i32) {
    %c0_i32 = arith.constant 0 : i32
    %c0_i32_0 = arith.constant 0 : i32
    %c0_i32_1 = arith.constant 0 : i32
    return %c0_i32, %c0_i32_0 : i32, i32
  }
  func.func @transform_5(%arg0: i32) -> (i32, i32) {
    %c0_i32 = arith.constant 0 : i32
    %c0_i32_0 = arith.constant 0 : i32
    %c0_i32_1 = arith.constant 0 : i32
    return %c0_i32, %c0_i32_0 : i32, i32
  }
  func.func @transform_6(%arg0: i32) -> (i32, i32) {
    %c0_i32 = arith.constant 0 : i32
    %c0_i32_0 = arith.constant 0 : i32
    %c0_i32_1 = arith.constant 0 : i32
    return %c0_i32, %c0_i32_0 : i32, i32
  }
  func.func @transform_7(%arg0: i32) -> (i32, i32) {
    %c0_i32 = arith.constant 0 : i32
    %c0_i32_0 = arith.constant 0 : i32
    %c0_i32_1 = arith.constant 0 : i32
    return %c0_i32, %c0_i32_0 : i32, i32
  }
  func.func @transform_8(%arg0: i32) -> (i32, i32) {
    %c0_i32 = arith.constant 0 : i32
    %c0_i32_0 = arith.constant 0 : i32
    return %arg0, %c0_i32 : i32, i32
  }
}

module attributes {stable_mosaic.version = 11 : i64} {
  func.func @kernel(%arg0: i32, %arg1: memref<128x128xbf16, #tpu.memory_space<vmem>>, %arg2: memref<128x256xbf16, #tpu.memory_space<vmem>>, %arg3: memref<1x256xf32, #tpu.memory_space<vmem>>, %arg4: memref<256x128xbf16, #tpu.memory_space<vmem>>, %arg5: memref<1x128xf32, #tpu.memory_space<vmem>>, %arg6: memref<128x128xbf16, #tpu.memory_space<vmem>>, %arg7: memref<256x128xbf16, #tpu.memory_space<vmem>>, %arg8: memref<1x128xf32, #tpu.memory_space<vmem>>, %arg9: memref<128x128xf32, #tpu.memory_space<vmem>>) attributes {dimension_semantics = [#tpu.dimension_semantics<parallel>], iteration_bounds = array<i64: 2>, scalar_prefetch = 0 : i64, scratch_operands = 0 : i64, tpu.core_type = #tpu.core_type<tc>, window_params = [{transform_indices = @transform_0, window_bounds = array<i64: 128, 128>}, {pipeline_mode = #tpu.pipeline_mode<synchronous>, transform_indices = @transform_1, window_bounds = array<i64: 128, 256>}, {pipeline_mode = #tpu.pipeline_mode<synchronous>, transform_indices = @transform_2, window_bounds = array<i64: 1, 256>}, {pipeline_mode = #tpu.pipeline_mode<synchronous>, transform_indices = @transform_3, window_bounds = array<i64: 256, 128>}, {pipeline_mode = #tpu.pipeline_mode<synchronous>, transform_indices = @transform_4, window_bounds = array<i64: 1, 128>}, {pipeline_mode = #tpu.pipeline_mode<synchronous>, transform_indices = @transform_5, window_bounds = array<i64: 128, 128>}, {pipeline_mode = #tpu.pipeline_mode<synchronous>, transform_indices = @transform_6, window_bounds = array<i64: 256, 128>}, {pipeline_mode = #tpu.pipeline_mode<synchronous>, transform_indices = @transform_7, window_bounds = array<i64: 1, 128>}, {transform_indices = @transform_8, window_bounds = array<i64: 128, 128>}]} {
    %c0 = arith.constant 0 : index
    %c0_0 = arith.constant 0 : index
    %0 = vector.load %arg1[%c0, %c0_0] : memref<128x128xbf16, #tpu.memory_space<vmem>>, vector<128x128xbf16>
    %c0_1 = arith.constant 0 : index
    %c0_2 = arith.constant 0 : index
    %1 = vector.load %arg2[%c0_1, %c0_2] : memref<128x256xbf16, #tpu.memory_space<vmem>>, vector<128x256xbf16>
    %cst = arith.constant dense<0.000000e+00> : vector<128x256xf32>
    %2 = tpu.matmul %0, %1, %cst {dimension_numbers = #tpu.dot_dimension_numbers<[1], [0], [0], [1], [0, 0, 1, 1], [], []>} : vector<128x128xbf16>, vector<128x256xbf16>, vector<128x256xf32> -> vector<128x256xf32>
    %c0_3 = arith.constant 0 : index
    %c0_4 = arith.constant 0 : index
    %3 = vector.load %arg3[%c0_3, %c0_4] : memref<1x256xf32, #tpu.memory_space<vmem>>, vector<1x256xf32>
    %4 = vector.broadcast %3 : vector<1x256xf32> to vector<128x256xf32>
    %5 = arith.addf %2, %4 : vector<128x256xf32>
    %cst_5 = arith.constant 0.000000e+00 : f32
    %6 = vector.broadcast %cst_5 : f32 to vector<128x256xf32>
    %7 = arith.maximumf %5, %6 : vector<128x256xf32>
    %8 = arith.truncf %7 : vector<128x256xf32> to vector<128x256xbf16>
    %c0_6 = arith.constant 0 : index
    %c0_7 = arith.constant 0 : index
    %9 = vector.load %arg4[%c0_6, %c0_7] : memref<256x128xbf16, #tpu.memory_space<vmem>>, vector<256x128xbf16>
    %cst_8 = arith.constant dense<0.000000e+00> : vector<128x128xf32>
    %10 = tpu.matmul %8, %9, %cst_8 {dimension_numbers = #tpu.dot_dimension_numbers<[1], [0], [0], [1], [0, 0, 1, 1], [], []>} : vector<128x256xbf16>, vector<256x128xbf16>, vector<128x128xf32> -> vector<128x128xf32>
    %c0_9 = arith.constant 0 : index
    %c0_10 = arith.constant 0 : index
    %11 = vector.load %arg5[%c0_9, %c0_10] : memref<1x128xf32, #tpu.memory_space<vmem>>, vector<1x128xf32>
    %12 = vector.broadcast %11 : vector<1x128xf32> to vector<128x128xf32>
    %13 = arith.addf %10, %12 : vector<128x128xf32>
    %cst_11 = arith.constant 0.000000e+00 : f32
    %14 = vector.broadcast %cst_11 : f32 to vector<128x128xf32>
    %15 = arith.maximumf %13, %14 : vector<128x128xf32>
    %16 = arith.truncf %15 : vector<128x128xf32> to vector<128x128xbf16>
    %c0_12 = arith.constant 0 : index
    %c0_13 = arith.constant 0 : index
    %17 = vector.load %arg6[%c0_12, %c0_13] : memref<128x128xbf16, #tpu.memory_space<vmem>>, vector<128x128xbf16>
    %cst_14 = arith.constant dense<0.000000e+00> : vector<128x128xf32>
    %18 = tpu.matmul %16, %17, %cst_14 {dimension_numbers = #tpu.dot_dimension_numbers<[1], [0], [0], [1], [0, 0, 1, 1], [], []>} : vector<128x128xbf16>, vector<128x128xbf16>, vector<128x128xf32> -> vector<128x128xf32>
    %19 = arith.truncf %5 : vector<128x256xf32> to vector<128x256xbf16>
    %c0_15 = arith.constant 0 : index
    %c0_16 = arith.constant 0 : index
    %20 = vector.load %arg7[%c0_15, %c0_16] : memref<256x128xbf16, #tpu.memory_space<vmem>>, vector<256x128xbf16>
    %cst_17 = arith.constant dense<0.000000e+00> : vector<128x128xf32>
    %21 = tpu.matmul %19, %20, %cst_17 {dimension_numbers = #tpu.dot_dimension_numbers<[1], [0], [0], [1], [0, 0, 1, 1], [], []>} : vector<128x256xbf16>, vector<256x128xbf16>, vector<128x128xf32> -> vector<128x128xf32>
    %22 = arith.addf %18, %21 : vector<128x128xf32>
    %c0_18 = arith.constant 0 : index
    %c0_19 = arith.constant 0 : index
    %23 = vector.load %arg8[%c0_18, %c0_19] : memref<1x128xf32, #tpu.memory_space<vmem>>, vector<1x128xf32>
    %24 = vector.broadcast %23 : vector<1x128xf32> to vector<128x128xf32>
    %25 = arith.addf %22, %24 : vector<128x128xf32>
    %c0_20 = arith.constant 0 : index
    %c0_21 = arith.constant 0 : index
    %26 = vector.load %arg9[%c0_20, %c0_21] : memref<128x128xf32, #tpu.memory_space<vmem>>, vector<128x128xf32>
    tpu.vector_store %arg9[%c0_20, %c0_21], %25 {strides = array<i32>} : memref<128x128xf32, #tpu.memory_space<vmem>>, vector<128x128xf32>,
    return
  }
  func.func @transform_0(%arg0: i32) -> (i32, i32) {
    %c0_i32 = arith.constant 0 : i32
    %c0_i32_0 = arith.constant 0 : i32
    return %arg0, %c0_i32 : i32, i32
  }
  func.func @transform_1(%arg0: i32) -> (i32, i32) {
    %c0_i32 = arith.constant 0 : i32
    %c0_i32_0 = arith.constant 0 : i32
    %c0_i32_1 = arith.constant 0 : i32
    return %c0_i32, %c0_i32_0 : i32, i32
  }
  func.func @transform_2(%arg0: i32) -> (i32, i32) {
    %c0_i32 = arith.constant 0 : i32
    %c0_i32_0 = arith.constant 0 : i32
    %c0_i32_1 = arith.constant 0 : i32
    return %c0_i32, %c0_i32_0 : i32, i32
  }
  func.func @transform_3(%arg0: i32) -> (i32, i32) {
    %c0_i32 = arith.constant 0 : i32
    %c0_i32_0 = arith.constant 0 : i32
    %c0_i32_1 = arith.constant 0 : i32
    return %c0_i32, %c0_i32_0 : i32, i32
  }
  func.func @transform_4(%arg0: i32) -> (i32, i32) {
    %c0_i32 = arith.constant 0 : i32
    %c0_i32_0 = arith.constant 0 : i32
    %c0_i32_1 = arith.constant 0 : i32
    return %c0_i32, %c0_i32_0 : i32, i32
  }
  func.func @transform_5(%arg0: i32) -> (i32, i32) {
    %c0_i32 = arith.constant 0 : i32
    %c0_i32_0 = arith.constant 0 : i32
    %c0_i32_1 = arith.constant 0 : i32
    return %c0_i32, %c0_i32_0 : i32, i32
  }
  func.func @transform_6(%arg0: i32) -> (i32, i32) {
    %c0_i32 = arith.constant 0 : i32
    %c0_i32_0 = arith.constant 0 : i32
    %c0_i32_1 = arith.constant 0 : i32
    return %c0_i32, %c0_i32_0 : i32, i32
  }
  func.func @transform_7(%arg0: i32) -> (i32, i32) {
    %c0_i32 = arith.constant 0 : i32
    %c0_i32_0 = arith.constant 0 : i32
    %c0_i32_1 = arith.constant 0 : i32
    return %c0_i32, %c0_i32_0 : i32, i32
  }
  func.func @transform_8(%arg0: i32) -> (i32, i32) {
    %c0_i32 = arith.constant 0 : i32
    %c0_i32_0 = arith.constant 0 : i32
    return %arg0, %c0_i32 : i32, i32
  }
}

</mosaic_0001>

<llo_original>
// kernel: tpu_custom_call.1
$region0: #{tpu_custom_call.1}
  #allocation0 [shape = 'u32[]', space=smem, size = 0x4, offset = 0x4, fixed_abs, tag = 'smem constant byte address 0x4 - core index']
  #allocation1 [shape = 'u32[144,128]{1,0:T(1,128)}', space=vmem, size = 0x12000, scoped, tag = 'internal scratch']
  %s0 = inlined_call_operand.hbm [shape: bf16[256,128], index: 0, kind: input, shape index: {}]
  %s1 = inlined_call_operand.hbm [shape: bf16[128,256], index: 1, kind: input, shape index: {}]
  %s2 = inlined_call_operand.vmem [shape: f32[1,256], index: 2, kind: input, shape index: {}]
  %s3 = inlined_call_operand.hbm [shape: bf16[256,128], index: 3, kind: input, shape index: {}]
  %s4 = inlined_call_operand.vmem [shape: f32[1,128], index: 4, kind: input, shape index: {}]
  %s5 = inlined_call_operand.hbm [shape: bf16[128,128], index: 5, kind: input, shape index: {}]
  %s6 = inlined_call_operand.hbm [shape: bf16[256,128], index: 6, kind: input, shape index: {}]
  %s7 = inlined_call_operand.vmem [shape: f32[1,128], index: 7, kind: input, shape index: {}]
  %s8 = inlined_call_operand.hbm [shape: f32[256,128], index: 8, kind: output, shape index: {}]
  %s9 = sld [smem:[#allocation0]]
  $region85: #{tpu_custom_call.1} parent=0
    _
  %s11 = ssub.s32 1, %s9
  %s12 = scalar_select 0, %s11, %s9
  $region1: #{tpu_custom_call.1} parent=0
    #allocation2 [shape = 'u8[65536]{0}', space=vmem, size = 0x10000, scoped, tag = 'input window, operand 0']
    #allocation3 [shape = 's32[2]{0}', space=sflag, size = 0x8, scoped, tag = 'scoped memory for tpu_custom_call.1']
    #allocation4 [shape = 's32[2]{0}', space=sflag, size = 0x8, scoped, tag = 'scoped memory for tpu_custom_call.1']
    #allocation5 [shape = 'u8[65536]{0}', space=vmem, size = 0x10000, scoped, tag = 'input window, operand 1, single buffered']
    #allocation6 [shape = 's32[1]{0}', space=sflag, size = 0x4, scoped, tag = 'scoped memory for tpu_custom_call.1']
    #allocation7 [shape = 'u8[65536]{0}', space=vmem, size = 0x10000, scoped, tag = 'input window, operand 3, single buffered']
    #allocation8 [shape = 'u8[32768]{0}', space=vmem, size = 0x8000, scoped, tag = 'input window, operand 5, single buffered']
    #allocation9 [shape = 's32[1]{0}', space=sflag, size = 0x4, scoped, tag = 'scoped memory for tpu_custom_call.1']
    #allocation10 [shape = 'u8[65536]{0}', space=vmem, size = 0x10000, scoped, tag = 'input window, operand 6, single buffered']
    #allocation11 [shape = 'u8[131072]{0}', space=vmem, size = 0x20000, scoped, tag = 'output window, operand 0']
    %13 = vsyncpa [#allocation3], 0
    %s14 = scalar_lea.sflag [#allocation3], 1
    %15 = vsyncpa %s14, 0
    %16 = vsyncpa [#allocation6], 0
    %17 = vsyncpa [#allocation9], 0
    %18 = vsyncpa [#allocation4], 0
    %s19 = scalar_lea.sflag [#allocation4], 1
    %20 = vsyncpa %s19, 0
    loop: start=0, step=1, limit=4
    $region2: #{tpu_custom_call.1} parent=1 // loop_pre_header
      _
    $region3: #{tpu_custom_call.1} parent=1 // loop_header
      %s22 = sphi 0, %s26
      %p23 = scmp.ge.s32.totalorder %s22, 4
      %s32 = sphi 0, %s34
      %s35 = sphi 0, %s32
      %s36 = sphi 0, %s35
      %s52 = sphi 0, %s36
      %s56 = sphi 0, %s56
      %s58 = sphi 0, %s56
      %s59 = sphi 0, %s58
      %s73 = sphi 0, %s59
      %s77 = sphi 0, %s77
      %s79 = sphi 0, %s77
      %s80 = sphi 0, %s79
      %s94 = sphi 0, %s80
      %s98 = sphi 0, %s98
      %s100 = sphi 0, %s98
      %s101 = sphi 0, %s100
      %s115 = sphi 0, %s101
      %s119 = sphi 0, %s119
      %s121 = sphi 0, %s119
      %s122 = sphi 0, %s121
      %s136 = sphi 0, %s122
      %s140 = sphi 0, %s140
      %s142 = sphi 0, %s140
      %s143 = sphi 0, %s142
      %s157 = sphi 0, %s143
      %s161 = sphi 0, %s161
      %s163 = sphi 0, %s161
      %s164 = sphi 0, %s163
      %s178 = sphi 0, %s164
      %s182 = sphi 0, %s182
      %s184 = sphi 0, %s182
      %s185 = sphi 0, %s184
      %s199 = sphi 0, %s185
      %s205 = sphi 0, %s207
      %s208 = sphi 0, %s205
      %s209 = sphi 0, %s208
      %s225 = sphi 0, %s209
    $region4: #{tpu_custom_call.1} parent=1 // loop_header_branch
      %25 = sbr.rel (%p23) target = $region8
    $region5: #{tpu_custom_call.1} parent=1 // loop_body
      %s27 = ssub.s32 %s22, 1
      %s28 = ssub.s32 %s22, 2
      %s29 = sadd.s32 %s22, 1
      %s30 = ssub.s32 %s22, %s29
      %p31 = scmp.eq.s32.totalorder %s30, 0
      %s33 = sadd.s32 %s32, 1
      %s34 = scalar_select %p31, %s32, %s33
      %p37 = pneg %p31
      %p38 = scmp.eq.s32.totalorder %s22, 1
      %p39 = por %p37, %p38
      %p40 = scmp.ne.s32.totalorder %s32, %s35
      %p41 = scmp.eq.s32.totalorder %s22, 0
      %p42 = por %p40, %p41
      %p43 = scmp.ne.s32.totalorder %s32, %s35
      %p44 = scmp.eq.s32.totalorder %s27, 1
      %p45 = por %p43, %p44
      %p46 = scmp.ne.s32.totalorder %s35, %s36
      %p47 = scmp.eq.s32.totalorder %s27, 0
      %p48 = por %p46, %p47
      %p49 = scmp.ne.s32.totalorder %s35, %s36
      %p50 = scmp.eq.s32.totalorder %s28, 1
      %p51 = por %p49, %p50
      %p53 = scmp.ne.s32.totalorder %s36, %s52
      %p54 = scmp.eq.s32.totalorder %s28, 0
      %p55 = por %p53, %p54
      %s57 = sadd.s32 %s56, 1
      %p60 = scmp.eq.s32.totalorder %s22, 1
      %p61 = scmp.ne.s32.totalorder %s56, %s58
      %p62 = scmp.eq.s32.totalorder %s22, 0
      %p63 = por %p61, %p62
      %p64 = scmp.ne.s32.totalorder %s56, %s58
      %p65 = scmp.eq.s32.totalorder %s27, 1
      %p66 = por %p64, %p65
      %p67 = scmp.ne.s32.totalorder %s58, %s59
      %p68 = scmp.eq.s32.totalorder %s27, 0
      %p69 = por %p67, %p68
      %p70 = scmp.ne.s32.totalorder %s58, %s59
      %p71 = scmp.eq.s32.totalorder %s28, 1
      %p72 = por %p70, %p71
      %p74 = scmp.ne.s32.totalorder %s59, %s73
      %p75 = scmp.eq.s32.totalorder %s28, 0
      %p76 = por %p74, %p75
      %s78 = sadd.s32 %s77, 1
      %p81 = scmp.eq.s32.totalorder %s22, 1
      %p82 = scmp.ne.s32.totalorder %s77, %s79
      %p83 = scmp.eq.s32.totalorder %s22, 0
      %p84 = por %p82, %p83
      %p85 = scmp.ne.s32.totalorder %s77, %s79
      %p86 = scmp.eq.s32.totalorder %s27, 1
      %p87 = por %p85, %p86
      %p88 = scmp.ne.s32.totalorder %s79, %s80
      %p89 = scmp.eq.s32.totalorder %s27, 0
      %p90 = por %p88, %p89
      %p91 = scmp.ne.s32.totalorder %s79, %s80
      %p92 = scmp.eq.s32.totalorder %s28, 1
      %p93 = por %p91, %p92
      %p95 = scmp.ne.s32.totalorder %s80, %s94
      %p96 = scmp.eq.s32.totalorder %s28, 0
      %p97 = por %p95, %p96
      %s99 = sadd.s32 %s98, 1
      %p102 = scmp.eq.s32.totalorder %s22, 1
      %p103 = scmp.ne.s32.totalorder %s98, %s100
      %p104 = scmp.eq.s32.totalorder %s22, 0
      %p105 = por %p103, %p104
      %p106 = scmp.ne.s32.totalorder %s98, %s100
      %p107 = scmp.eq.s32.totalorder %s27, 1
      %p108 = por %p106, %p107
      %p109 = scmp.ne.s32.totalorder %s100, %s101
      %p110 = scmp.eq.s32.totalorder %s27, 0
      %p111 = por %p109, %p110
      %p112 = scmp.ne.s32.totalorder %s100, %s101
      %p113 = scmp.eq.s32.totalorder %s28, 1
      %p114 = por %p112, %p113
      %p116 = scmp.ne.s32.totalorder %s101, %s115
      %p117 = scmp.eq.s32.totalorder %s28, 0
      %p118 = por %p116, %p117
      %s120 = sadd.s32 %s119, 1
      %p123 = scmp.eq.s32.totalorder %s22, 1
      %p124 = scmp.ne.s32.totalorder %s119, %s121
      %p125 = scmp.eq.s32.totalorder %s22, 0
      %p126 = por %p124, %p125
      %p127 = scmp.ne.s32.totalorder %s119, %s121
      %p128 = scmp.eq.s32.totalorder %s27, 1
      %p129 = por %p127, %p128
      %p130 = scmp.ne.s32.totalorder %s121, %s122
      %p131 = scmp.eq.s32.totalorder %s27, 0
      %p132 = por %p130, %p131
      %p133 = scmp.ne.s32.totalorder %s121, %s122
      %p134 = scmp.eq.s32.totalorder %s28, 1
      %p135 = por %p133, %p134
      %p137 = scmp.ne.s32.totalorder %s122, %s136
      %p138 = scmp.eq.s32.totalorder %s28, 0
      %p139 = por %p137, %p138
      %s141 = sadd.s32 %s140, 1
      %p144 = scmp.eq.s32.totalorder %s22, 1
      %p145 = scmp.ne.s32.totalorder %s140, %s142
      %p146 = scmp.eq.s32.totalorder %s22, 0
      %p147 = por %p145, %p146
      %p148 = scmp.ne.s32.totalorder %s140, %s142
      %p149 = scmp.eq.s32.totalorder %s27, 1
      %p150 = por %p148, %p149
      %p151 = scmp.ne.s32.totalorder %s142, %s143
      %p152 = scmp.eq.s32.totalorder %s27, 0
      %p153 = por %p151, %p152
      %p154 = scmp.ne.s32.totalorder %s142, %s143
      %p155 = scmp.eq.s32.totalorder %s28, 1
      %p156 = por %p154, %p155
      %p158 = scmp.ne.s32.totalorder %s143, %s157
      %p159 = scmp.eq.s32.totalorder %s28, 0
      %p160 = por %p158, %p159
      %s162 = sadd.s32 %s161, 1
      %p165 = scmp.eq.s32.totalorder %s22, 1
      %p166 = scmp.ne.s32.totalorder %s161, %s163
      %p167 = scmp.eq.s32.totalorder %s22, 0
      %p168 = por %p166, %p167
      %p169 = scmp.ne.s32.totalorder %s161, %s163
      %p170 = scmp.eq.s32.totalorder %s27, 1
      %p171 = por %p169, %p170
      %p172 = scmp.ne.s32.totalorder %s163, %s164
      %p173 = scmp.eq.s32.totalorder %s27, 0
      %p174 = por %p172, %p173
      %p175 = scmp.ne.s32.totalorder %s163, %s164
      %p176 = scmp.eq.s32.totalorder %s28, 1
      %p177 = por %p175, %p176
      %p179 = scmp.ne.s32.totalorder %s164, %s178
      %p180 = scmp.eq.s32.totalorder %s28, 0
      %p181 = por %p179, %p180
      %s183 = sadd.s32 %s182, 1
      %p186 = scmp.eq.s32.totalorder %s22, 1
      %p187 = scmp.ne.s32.totalorder %s182, %s184
      %p188 = scmp.eq.s32.totalorder %s22, 0
      %p189 = por %p187, %p188
      %p190 = scmp.ne.s32.totalorder %s182, %s184
      %p191 = scmp.eq.s32.totalorder %s27, 1
      %p192 = por %p190, %p191
      %p193 = scmp.ne.s32.totalorder %s184, %s185
      %p194 = scmp.eq.s32.totalorder %s27, 0
      %p195 = por %p193, %p194
      %p196 = scmp.ne.s32.totalorder %s184, %s185
      %p197 = scmp.eq.s32.totalorder %s28, 1
      %p198 = por %p196, %p197
      %p200 = scmp.ne.s32.totalorder %s185, %s199
      %p201 = scmp.eq.s32.totalorder %s28, 0
      %p202 = por %p200, %p201
      %s203 = ssub.s32 %s22, %s29
      %p204 = scmp.eq.s32.totalorder %s203, 0
      %s206 = sadd.s32 %s205, 1
      %s207 = scalar_select %p204, %s205, %s206
      %p210 = pneg %p204
      %p211 = scmp.eq.s32.totalorder %s22, 1
      %p212 = por %p210, %p211
      %p213 = scmp.ne.s32.totalorder %s205, %s208
      %p214 = scmp.eq.s32.totalorder %s22, 0
      %p215 = por %p213, %p214
      %p216 = scmp.ne.s32.totalorder %s205, %s208
      %p217 = scmp.eq.s32.totalorder %s27, 1
      %p218 = por %p216, %p217
      %p219 = scmp.ne.s32.totalorder %s208, %s209
      %p220 = scmp.eq.s32.totalorder %s27, 0
      %p221 = por %p219, %p220
      %p222 = scmp.ne.s32.totalorder %s208, %s209
      %p223 = scmp.eq.s32.totalorder %s28, 1
      %p224 = por %p222, %p223
      %p226 = scmp.ne.s32.totalorder %s209, %s225
      %p227 = scmp.eq.s32.totalorder %s28, 0
      %p228 = por %p226, %p227
      %p229 = scmp.le.s32.totalorder 1, %s22
      %p230 = scmp.lt.s32.totalorder %s22, 3
      %p231 = pnand %p229, %p230
      %p232 = pneg %p231
      // Predicated region
      $region9: #{tpu_custom_call.1} parent=5 // pred_check
        _
      $region10: #{tpu_custom_call.1} parent=5 // pred_check_branch
        %234 = sbr.rel (%p231) target = $region12
      $region11: #{tpu_custom_call.1} parent=5 // pred_region
        %s235 = ssub.s32 %s22, 1
        // Predicated region
        $region13: #{tpu_custom_call.1} parent=11 // pred_check
          %p236 = pneg %p69
        $region14: #{tpu_custom_call.1} parent=11 // pred_check_branch
          %238 = sbr.rel (%p236) target = $region16
        $region15: #{tpu_custom_call.1} parent=11 // pred_region
          %s240 = ssub.s32 2048, 2048
          %241 = vsyncadd [#allocation6], %s240
          %s242 = sshll.u32 [#allocation5], 4
          %s243 = int_to_ptr.vmem [resolvable:$true] %s242
          %248 = dma.hbm_to_vmem [thread:$0]  %s1, 2048, %s243, [#allocation6], 128, 128, 8
        $region16: #{tpu_custom_call.1} parent=11 // pred_fallthru
          _
        // Predicated region
        $region17: #{tpu_custom_call.1} parent=11 // pred_check
          %p249 = pneg %p90
        $region18: #{tpu_custom_call.1} parent=11 // pred_check_branch
          %251 = sbr.rel (%p249) target = $region20
        $region19: #{tpu_custom_call.1} parent=11 // pred_region
          _
        $region20: #{tpu_custom_call.1} parent=11 // pred_fallthru
          _
        // Predicated region
        $region21: #{tpu_custom_call.1} parent=11 // pred_check
          %p252 = pneg %p111
        $region22: #{tpu_custom_call.1} parent=11 // pred_check_branch
          %254 = sbr.rel (%p252) target = $region24
        $region23: #{tpu_custom_call.1} parent=11 // pred_region
          %s256 = ssub.s32 2048, 2048
          %257 = vsyncadd [#allocation6], %s256
          %s258 = sshll.u32 [#allocation7], 4
          %s259 = int_to_ptr.vmem [resolvable:$true] %s258
          %264 = dma.hbm_to_vmem [thread:$0]  %s3, 2048, %s259, [#allocation6], 64, 64, 4
        $region24: #{tpu_custom_call.1} parent=11 // pred_fallthru
          _
        // Predicated region
        $region25: #{tpu_custom_call.1} parent=11 // pred_check
          %p265 = pneg %p132
        $region26: #{tpu_custom_call.1} parent=11 // pred_check_branch
          %267 = sbr.rel (%p265) target = $region28
        $region27: #{tpu_custom_call.1} parent=11 // pred_region
          _
        $region28: #{tpu_custom_call.1} parent=11 // pred_fallthru
          _
        // Predicated region
        $region29: #{tpu_custom_call.1} parent=11 // pred_check
          %p268 = pneg %p153
        $region30: #{tpu_custom_call.1} parent=11 // pred_check_branch
          %270 = sbr.rel (%p268) target = $region32
        $region31: #{tpu_custom_call.1} parent=11 // pred_region
          %s272 = ssub.s32 1024, 1024
          %273 = vsyncadd [#allocation9], %s272
          %s274 = sshll.u32 [#allocation8], 4
          %s275 = int_to_ptr.vmem [resolvable:$true] %s274
          %280 = dma.hbm_to_vmem [thread:$0]  %s5, 1024, %s275, [#allocation9], 64, 64, 4
        $region32: #{tpu_custom_call.1} parent=11 // pred_fallthru
          _
        // Predicated region
        $region33: #{tpu_custom_call.1} parent=11 // pred_check
          %p281 = pneg %p174
        $region34: #{tpu_custom_call.1} parent=11 // pred_check_branch
          %283 = sbr.rel (%p281) target = $region36
        $region35: #{tpu_custom_call.1} parent=11 // pred_region
          %s285 = ssub.s32 2048, 2048
          %286 = vsyncadd [#allocation9], %s285
          %s287 = sshll.u32 [#allocation10], 4
          %s288 = int_to_ptr.vmem [resolvable:$true] %s287
          %293 = dma.hbm_to_vmem [thread:$0]  %s6, 2048, %s288, [#allocation9], 64, 64, 4
        $region36: #{tpu_custom_call.1} parent=11 // pred_fallthru
          _
        // Predicated region
        $region37: #{tpu_custom_call.1} parent=11 // pred_check
          %p294 = pneg %p195
        $region38: #{tpu_custom_call.1} parent=11 // pred_check_branch
          %296 = sbr.rel (%p294) target = $region40
        $region39: #{tpu_custom_call.1} parent=11 // pred_region
          _
        $region40: #{tpu_custom_call.1} parent=11 // pred_fallthru
          _
      $region12: #{tpu_custom_call.1} parent=5 // pred_fallthru
        _
      %p297 = scmp.lt.s32.totalorder %s22, 2
      // Predicated region
      $region41: #{tpu_custom_call.1} parent=5 // pred_check
        %p298 = pneg %p297
      $region42: #{tpu_custom_call.1} parent=5 // pred_check_branch
        %300 = sbr.rel (%p298) target = $region44
      $region43: #{tpu_custom_call.1} parent=5 // pred_region
        // Predicated region
        $region45: #{tpu_custom_call.1} parent=43 // pred_check
          %p301 = pneg %p42
        $region46: #{tpu_custom_call.1} parent=43 // pred_check_branch
          %303 = sbr.rel (%p301) target = $region48
        $region47: #{tpu_custom_call.1} parent=43 // pred_region
          %s304 = sand.u32 %s32, 1
          %s305 = scalar_lea.sflag [#allocation3], %s304
          %s306 = sand.u32 %s32, 1
          %s307 = smul.addr %s306, 64
          %s308 = scalar_lea.vmem [#allocation2], %s307
          %s309 = smul.u32 16, %s22
          %s311 = ssub.s32 1024, 1024
          %312 = vsyncadd %s305, %s311
          %s313 = smul.addr %s309, 64
          %s314 = scalar_lea.hbm %s0, %s313
          %s315 = sshll.u32 %s308, 4
          %s316 = int_to_ptr.vmem [resolvable:$true] %s315
          %321 = dma.hbm_to_vmem [thread:$0]  %s314, 1024, %s316, %s305, 64, 64, 4
        $region48: #{tpu_custom_call.1} parent=43 // pred_fallthru
          _
      $region44: #{tpu_custom_call.1} parent=5 // pred_fallthru
        _
      %p322 = scmp.le.s32.totalorder 1, %s22
      %p323 = scmp.lt.s32.totalorder %s22, 3
      %p324 = pnand %p322, %p323
      %p325 = pneg %p324
      // Predicated region
      $region49: #{tpu_custom_call.1} parent=5 // pred_check
        _
      $region50: #{tpu_custom_call.1} parent=5 // pred_check_branch
        %327 = sbr.rel (%p324) target = $region52
      $region51: #{tpu_custom_call.1} parent=5 // pred_region
        %s328 = ssub.s32 %s22, 1
        %s329 = sand.u32 %s35, 1
        %s330 = scalar_lea.sflag [#allocation3], %s329
        %s331 = sand.u32 %s35, 1
        %s332 = smul.addr %s331, 64
        %s333 = scalar_lea.vmem [#allocation2], %s332
        // Predicated region
        $region53: #{tpu_custom_call.1} parent=51 // pred_check
          %p334 = pneg %p48
        $region54: #{tpu_custom_call.1} parent=51 // pred_check_branch
          %336 = sbr.rel (%p334) target = $region56
        $region55: #{tpu_custom_call.1} parent=51 // pred_region
          %337 = dma.done %s330, 1024
        $region56: #{tpu_custom_call.1} parent=51 // pred_fallthru
          _
        // Predicated region
        $region57: #{tpu_custom_call.1} parent=51 // pred_check
          %p338 = pneg %p69
        $region58: #{tpu_custom_call.1} parent=51 // pred_check_branch
          %340 = sbr.rel (%p338) target = $region60
        $region59: #{tpu_custom_call.1} parent=51 // pred_region
          %341 = dma.done [#allocation6], 2048
        $region60: #{tpu_custom_call.1} parent=51 // pred_fallthru
          _
        // Predicated region
        $region61: #{tpu_custom_call.1} parent=51 // pred_check
          %p342 = pneg %p111
        $region62: #{tpu_custom_call.1} parent=51 // pred_check_branch
          %344 = sbr.rel (%p342) target = $region64
        $region63: #{tpu_custom_call.1} parent=51 // pred_region
          %345 = dma.done [#allocation6], 2048
        $region64: #{tpu_custom_call.1} parent=51 // pred_fallthru
          _
        // Predicated region
        $region65: #{tpu_custom_call.1} parent=51 // pred_check
          %p346 = pneg %p153
        $region66: #{tpu_custom_call.1} parent=51 // pred_check_branch
          %348 = sbr.rel (%p346) target = $region68
        $region67: #{tpu_custom_call.1} parent=51 // pred_region
          %349 = dma.done [#allocation9], 1024
        $region68: #{tpu_custom_call.1} parent=51 // pred_fallthru
          _
        // Predicated region
        $region69: #{tpu_custom_call.1} parent=51 // pred_check
          %p350 = pneg %p174
        $region70: #{tpu_custom_call.1} parent=51 // pred_check_branch
          %352 = sbr.rel (%p350) target = $region72
        $region71: #{tpu_custom_call.1} parent=51 // pred_region
          %353 = dma.done [#allocation9], 2048
        $region72: #{tpu_custom_call.1} parent=51 // pred_fallthru
          _
        %s354 = sand.u32 %s35, 1
        %s355 = scalar_lea.sflag [#allocation3], %s354
        %s356 = sand.u32 %s35, 1
        %s357 = smul.addr %s356, 64
        %s358 = scalar_lea.vmem [#allocation2], %s357
        %p359 = pneg %p48
        %p360 = pneg %p45
        %p361 = pneg %p69
        %p362 = pneg %p66
        %p363 = pneg %p90
        %p364 = pneg %p87
        %p365 = pneg %p111
        %p366 = pneg %p108
        %p367 = pneg %p132
        %p368 = pneg %p129
        %p369 = pneg %p153
        %p370 = pneg %p150
        %p371 = pneg %p174
        %p372 = pneg %p171
        %p373 = pneg %p195
        %p374 = pneg %p192
        %p375 = pneg %p221
        %p376 = pneg %p218
        %s377 = sand.u32 %s208, 1
        %s378 = scalar_lea.sflag [#allocation4], %s377
        %s379 = sand.u32 %s208, 1
        %s380 = smul.addr %s379, 128
        %s381 = scalar_lea.vmem [#allocation11], %s380
        %s382 = smul.u32 16, %s27
        %s383 = smul.u32 16, %s27
        %v385 = vld [vmem:[%s333] sm:$0xf]
        %v386 = vld [vmem:[%s333 + $0x4] sm:$0xf]
        %v387 = vld [vmem:[%s333 + $0x8] sm:$0xf]
        %v388 = vld [vmem:[%s333 + $0xc] sm:$0xf]
        %v389 = vld [vmem:[%s333 + $0x10] sm:$0xf]
        %v390 = vld [vmem:[%s333 + $0x14] sm:$0xf]
        %v391 = vld [vmem:[%s333 + $0x18] sm:$0xf]
        %v392 = vld [vmem:[%s333 + $0x1c] sm:$0xf]
        %v393 = vld [vmem:[%s333 + $0x20] sm:$0xf]
        %v394 = vld [vmem:[%s333 + $0x24] sm:$0xf]
        %v395 = vld [vmem:[%s333 + $0x28] sm:$0xf]
        %v396 = vld [vmem:[%s333 + $0x2c] sm:$0xf]
        %v397 = vld [vmem:[%s333 + $0x30] sm:$0xf]
        %v398 = vld [vmem:[%s333 + $0x34] sm:$0xf]
        %v399 = vld [vmem:[%s333 + $0x38] sm:$0xf]
        %v400 = vld [vmem:[%s333 + $0x3c] sm:$0xf]
        %v401 = vld [vmem:[#allocation5] sm:$0xff]
        %v402 = vld [vmem:[#allocation5 + $0x8] sm:$0xff]
        %v403 = vld [vmem:[#allocation5 + $0x10] sm:$0xff]
        %v404 = vld [vmem:[#allocation5 + $0x18] sm:$0xff]
        %v405 = vld [vmem:[#allocation5 + $0x20] sm:$0xff]
        %v406 = vld [vmem:[#allocation5 + $0x28] sm:$0xff]
        %v407 = vld [vmem:[#allocation5 + $0x30] sm:$0xff]
        %v408 = vld [vmem:[#allocation5 + $0x38] sm:$0xff]
        %v409 = vld [vmem:[#allocation5 + $0x40] sm:$0xff]
        %v410 = vld [vmem:[#allocation5 + $0x48] sm:$0xff]
        %v411 = vld [vmem:[#allocation5 + $0x50] sm:$0xff]
        %v412 = vld [vmem:[#allocation5 + $0x58] sm:$0xff]
        %v413 = vld [vmem:[#allocation5 + $0x60] sm:$0xff]
        %v414 = vld [vmem:[#allocation5 + $0x68] sm:$0xff]
        %v415 = vld [vmem:[#allocation5 + $0x70] sm:$0xff]
        %v416 = vld [vmem:[#allocation5 + $0x78] sm:$0xff]
        %v417 = vld [vmem:[%s2] sm:$0x3]
        %v419 = vlaneseq
        %v420 = vshrl.u32 %v419, 7
        %v421 = vsub.s32 0, %v420
        %v422 = vrot.slane %v417, %v421
        %v423 = vlaneseq
        %v424 = vshrl.u32 %v423, 7
        %v425 = vsub.s32 1, %v424
        %v426 = vrot.slane %v417, %v425
        %v445 = vunpack.c.l.b16 %v385
        %v446 = vunpack.c.l.b16 %v386
        %v447 = vunpack.c.l.b16 %v387
        %v448 = vunpack.c.l.b16 %v388
        %v449 = vunpack.c.l.b16 %v389
        %v450 = vunpack.c.l.b16 %v390
        %v451 = vunpack.c.l.b16 %v391
        %v452 = vunpack.c.l.b16 %v392
        %v453 = vunpack.c.l.b16 %v393
        %v454 = vunpack.c.l.b16 %v394
        %v455 = vunpack.c.l.b16 %v395
        %v456 = vunpack.c.l.b16 %v396
        %v457 = vunpack.c.l.b16 %v397
        %v458 = vunpack.c.l.b16 %v398
        %v459 = vunpack.c.l.b16 %v399
        %v460 = vunpack.c.l.b16 %v400
        %v461 = vpack.c.b16 %v446, %v445
        %v462 = vpack.c.b16 %v448, %v447
        %v463 = vpack.c.b16 %v450, %v449
        %v464 = vpack.c.b16 %v452, %v451
        %v465 = vpack.c.b16 %v454, %v453
        %v466 = vpack.c.b16 %v456, %v455
        %v467 = vpack.c.b16 %v458, %v457
        %v468 = vpack.c.b16 %v460, %v459
        %v493 = vunpack.c.l.b16 %v401
        %v494 = vunpack.c.h.b16 %v401
        %v495 = vunpack.c.l.b16 %v402
        %v496 = vunpack.c.h.b16 %v402
        %v497 = vunpack.c.l.b16 %v403
        %v498 = vunpack.c.h.b16 %v403
        %v499 = vunpack.c.l.b16 %v404
        %v500 = vunpack.c.h.b16 %v404
        %v501 = vunpack.c.l.b16 %v405
        %v502 = vunpack.c.h.b16 %v405
        %v503 = vunpack.c.l.b16 %v406
        %v504 = vunpack.c.h.b16 %v406
        %v505 = vunpack.c.l.b16 %v407
        %v506 = vunpack.c.h.b16 %v407
        %v507 = vunpack.c.l.b16 %v408
        %v508 = vunpack.c.h.b16 %v408
        %v509 = vunpack.c.l.b16 %v409
        %v510 = vunpack.c.h.b16 %v409
        %v511 = vunpack.c.l.b16 %v410
        %v512 = vunpack.c.h.b16 %v410
        %v513 = vunpack.c.l.b16 %v411
        %v514 = vunpack.c.h.b16 %v411
        %v515 = vunpack.c.l.b16 %v412
        %v516 = vunpack.c.h.b16 %v412
        %v517 = vunpack.c.l.b16 %v413
        %v518 = vunpack.c.h.b16 %v413
        %v519 = vunpack.c.l.b16 %v414
        %v520 = vunpack.c.h.b16 %v414
        %v521 = vunpack.c.l.b16 %v415
        %v522 = vunpack.c.h.b16 %v415
        %v523 = vunpack.c.l.b16 %v416
        %v524 = vunpack.c.h.b16 %v416
        %v525 = vpack.c.b16 %v495, %v493
        %v526 = vpack.c.b16 %v496, %v494
        %v527 = vpack.c.b16 %v499, %v497
        %v528 = vpack.c.b16 %v500, %v498
        %v529 = vpack.c.b16 %v503, %v501
        %v530 = vpack.c.b16 %v504, %v502
        %v531 = vpack.c.b16 %v507, %v505
        %v532 = vpack.c.b16 %v508, %v506
        %v533 = vpack.c.b16 %v511, %v509
        %v534 = vpack.c.b16 %v512, %v510
        %v535 = vpack.c.b16 %v515, %v513
        %v536 = vpack.c.b16 %v516, %v514
        %v537 = vpack.c.b16 %v519, %v517
        %v538 = vpack.c.b16 %v520, %v518
        %v539 = vpack.c.b16 %v523, %v521
        %v540 = vpack.c.b16 %v524, %v522
        %557 = vmatprep.subr.bf16.mxu0 %v526
        %558 = vmatpush1.bf16.msra.mxu0 %v525
        %559 = vmatprep.subr.bf16.mxu0 %v528
        %560 = vmatpush1.bf16.msra.mxu0 %v527
        %561 = vmatprep.subr.bf16.mxu0 %v530
        %562 = vmatpush1.bf16.msra.mxu0 %v529
        %563 = vmatprep.subr.bf16.mxu0 %v532
        %564 = vmatpush1.bf16.msra.mxu0 %v531
        %565 = vmatprep.subr.bf16.mxu0 %v534
        %566 = vmatpush1.bf16.msra.mxu0 %v533
        %567 = vmatprep.subr.bf16.mxu0 %v536
        %568 = vmatpush1.bf16.msra.mxu0 %v535
        %569 = vmatprep.subr.bf16.mxu0 %v538
        %570 = vmatpush1.bf16.msra.mxu0 %v537
        %571 = vmatprep.subr.bf16.mxu0 %v540
        %572 = vmatpush1.bf16.msra.mxu0 %v539
        %573 = vmatprep.subr.bf16.mxu0 0
        %574 = vmatpush1.bf16.msra.mxu0 0
        %575 = vmatprep.subr.bf16.mxu0 0
        %576 = vmatpush1.bf16.msra.mxu0 0
        %577 = vmatprep.subr.bf16.mxu0 0
        %578 = vmatpush1.bf16.msra.mxu0 0
        %579 = vmatprep.subr.bf16.mxu0 0
        %580 = vmatpush1.bf16.msra.mxu0 0
        %581 = vmatprep.subr.bf16.mxu0 0
        %582 = vmatpush1.bf16.msra.mxu0 0
        %583 = vmatprep.subr.bf16.mxu0 0
        %584 = vmatpush1.bf16.msra.mxu0 0
        %585 = vmatprep.subr.bf16.mxu0 0
        %586 = vmatpush1.bf16.msra.mxu0 0
        %587 = vmatprep.subr.bf16.mxu0 0
        %588 = vmatpush1.bf16.msra.mxu0 0
        %589 = vmatprep.mubr.bf16.mxu0 0
        %590 = vmatmul.mubr.bf16.gmra.mrb[0].mxu0 %v461
        %v591 = vpop.f32.mrb[0].mxu0
        %v592 = vadd.f32 %v422, %v591
        %v593 = vpop.f32.mrb[0].mxu0
        %v594 = vadd.f32 %v426, %v593
        %v595 = vpop.f32.mrb[0].mxu0
        %v596 = vadd.f32 %v422, %v595
        %v597 = vpop.f32.mrb[0].mxu0
        %v598 = vadd.f32 %v426, %v597
        %599 = vmatprep.mubr.bf16.mxu0 0
        %600 = vmatmul.mubr.bf16.gmra.mrb[0].mxu0 %v462
        %v601 = vpop.f32.mrb[0].mxu0
        %v602 = vadd.f32 %v422, %v601
        %v603 = vpop.f32.mrb[0].mxu0
        %v604 = vadd.f32 %v426, %v603
        %v605 = vpop.f32.mrb[0].mxu0
        %v606 = vadd.f32 %v422, %v605
        %v607 = vpop.f32.mrb[0].mxu0
        %v608 = vadd.f32 %v426, %v607
        %609 = vmatprep.mubr.bf16.mxu0 0
        %610 = vmatmul.mubr.bf16.gmra.mrb[0].mxu0 %v463
        %v611 = vpop.f32.mrb[0].mxu0
        %v612 = vadd.f32 %v422, %v611
        %v613 = vpop.f32.mrb[0].mxu0
        %v614 = vadd.f32 %v426, %v613
        %v615 = vpop.f32.mrb[0].mxu0
        %v616 = vadd.f32 %v422, %v615
        %v617 = vpop.f32.mrb[0].mxu0
        %v618 = vadd.f32 %v426, %v617
        %619 = vmatprep.mubr.bf16.mxu0 0
        %620 = vmatmul.mubr.bf16.gmra.mrb[0].mxu0 %v464
        %v621 = vpop.f32.mrb[0].mxu0
        %v622 = vadd.f32 %v422, %v621
        %v623 = vpop.f32.mrb[0].mxu0
        %v624 = vadd.f32 %v426, %v623
        %v625 = vpop.f32.mrb[0].mxu0
        %v626 = vadd.f32 %v422, %v625
        %v627 = vpop.f32.mrb[0].mxu0
        %v628 = vadd.f32 %v426, %v627
        %629 = vmatprep.mubr.bf16.mxu0 0
        %630 = vmatmul.mubr.bf16.gmra.mrb[0].mxu0 %v465
        %v631 = vpop.f32.mrb[0].mxu0
        %v632 = vadd.f32 %v422, %v631
        %v633 = vpop.f32.mrb[0].mxu0
        %v634 = vadd.f32 %v426, %v633
        %v635 = vpop.f32.mrb[0].mxu0
        %v636 = vadd.f32 %v422, %v635
        %v637 = vpop.f32.mrb[0].mxu0
        %v638 = vadd.f32 %v426, %v637
        %639 = vmatprep.mubr.bf16.mxu0 0
        %640 = vmatmul.mubr.bf16.gmra.mrb[0].mxu0 %v466
        %v641 = vpop.f32.mrb[0].mxu0
        %v642 = vadd.f32 %v422, %v641
        %v643 = vpop.f32.mrb[0].mxu0
        %v644 = vadd.f32 %v426, %v643
        %v645 = vpop.f32.mrb[0].mxu0
        %v646 = vadd.f32 %v422, %v645
        %v647 = vpop.f32.mrb[0].mxu0
        %v648 = vadd.f32 %v426, %v647
        %649 = vmatprep.mubr.bf16.mxu0 0
        %650 = vmatmul.mubr.bf16.gmra.mrb[0].mxu0 %v467
        %v651 = vpop.f32.mrb[0].mxu0
        %v652 = vadd.f32 %v422, %v651
        %v653 = vpop.f32.mrb[0].mxu0
        %v654 = vadd.f32 %v426, %v653
        %v655 = vpop.f32.mrb[0].mxu0
        %v656 = vadd.f32 %v422, %v655
        %v657 = vpop.f32.mrb[0].mxu0
        %v658 = vadd.f32 %v426, %v657
        %659 = vmatprep.mubr.bf16.mxu0 0
        %660 = vmatmul.mubr.bf16.gmra.mrb[0].mxu0 %v468
        %v661 = vpop.f32.mrb[0].mxu0
        %v662 = vadd.f32 %v422, %v661
        %v663 = vpop.f32.mrb[0].mxu0
        %v664 = vadd.f32 %v426, %v663
        %v665 = vpop.f32.mrb[0].mxu0
        %v666 = vadd.f32 %v422, %v665
        %v667 = vpop.f32.mrb[0].mxu0
        %v668 = vadd.f32 %v426, %v667
        %669 = vdwg.mxu0
        %v670 = vmax.f32 %v592, 0.0
        %v671 = vmax.f32 %v594, 0.0
        %v672 = vmax.f32 %v596, 0.0
        %v673 = vmax.f32 %v598, 0.0
        %v674 = vmax.f32 %v602, 0.0
        %v675 = vmax.f32 %v604, 0.0
        %v676 = vmax.f32 %v606, 0.0
        %v677 = vmax.f32 %v608, 0.0
        %v678 = vmax.f32 %v612, 0.0
        %v679 = vmax.f32 %v614, 0.0
        %v680 = vmax.f32 %v616, 0.0
        %v681 = vmax.f32 %v618, 0.0
        %v682 = vmax.f32 %v622, 0.0
        %v683 = vmax.f32 %v624, 0.0
        %v684 = vmax.f32 %v626, 0.0
        %v685 = vmax.f32 %v628, 0.0
        %v686 = vmax.f32 %v632, 0.0
        %v687 = vmax.f32 %v634, 0.0
        %v688 = vmax.f32 %v636, 0.0
        %v689 = vmax.f32 %v638, 0.0
        %v690 = vmax.f32 %v642, 0.0
        %v691 = vmax.f32 %v644, 0.0
        %v692 = vmax.f32 %v646, 0.0
        %v693 = vmax.f32 %v648, 0.0
        %v694 = vmax.f32 %v652, 0.0
        %v695 = vmax.f32 %v654, 0.0
        %v696 = vmax.f32 %v656, 0.0
        %v697 = vmax.f32 %v658, 0.0
        %v698 = vmax.f32 %v662, 0.0
        %v699 = vmax.f32 %v664, 0.0
        %v700 = vmax.f32 %v666, 0.0
        %v701 = vmax.f32 %v668, 0.0
        %v702 = vpack.c.bf16 %v672, %v670
        %v703 = vpack.c.bf16 %v673, %v671
        %v704 = vpack.c.bf16 %v676, %v674
        %v705 = vpack.c.bf16 %v677, %v675
        %v706 = vpack.c.bf16 %v680, %v678
        %v707 = vpack.c.bf16 %v681, %v679
        %v708 = vpack.c.bf16 %v684, %v682
        %v709 = vpack.c.bf16 %v685, %v683
        %v710 = vpack.c.bf16 %v688, %v686
        %v711 = vpack.c.bf16 %v689, %v687
        %v712 = vpack.c.bf16 %v692, %v690
        %v713 = vpack.c.bf16 %v693, %v691
        %v714 = vpack.c.bf16 %v696, %v694
        %v715 = vpack.c.bf16 %v697, %v695
        %v716 = vpack.c.bf16 %v700, %v698
        %v717 = vpack.c.bf16 %v701, %v699
        %v718 = vld [vmem:[#allocation7] sm:$0xf]
        %v719 = vld [vmem:[#allocation7 + $0x4] sm:$0xf]
        %v720 = vld [vmem:[#allocation7 + $0x8] sm:$0xf]
        %v721 = vld [vmem:[#allocation7 + $0xc] sm:$0xf]
        %v722 = vld [vmem:[#allocation7 + $0x10] sm:$0xf]
        %v723 = vld [vmem:[#allocation7 + $0x14] sm:$0xf]
        %v724 = vld [vmem:[#allocation7 + $0x18] sm:$0xf]
        %v725 = vld [vmem:[#allocation7 + $0x1c] sm:$0xf]
        %v726 = vld [vmem:[#allocation7 + $0x20] sm:$0xf]
        %v727 = vld [vmem:[#allocation7 + $0x24] sm:$0xf]
        %v728 = vld [vmem:[#allocation7 + $0x28] sm:$0xf]
        %v729 = vld [vmem:[#allocation7 + $0x2c] sm:$0xf]
        %v730 = vld [vmem:[#allocation7 + $0x30] sm:$0xf]
        %v731 = vld [vmem:[#allocation7 + $0x34] sm:$0xf]
        %v732 = vld [vmem:[#allocation7 + $0x38] sm:$0xf]
        %v733 = vld [vmem:[#allocation7 + $0x3c] sm:$0xf]
        %v734 = vld [vmem:[#allocation7 + $0x40] sm:$0xf]
        %v735 = vld [vmem:[#allocation7 + $0x44] sm:$0xf]
        %v736 = vld [vmem:[#allocation7 + $0x48] sm:$0xf]
        %v737 = vld [vmem:[#allocation7 + $0x4c] sm:$0xf]
        %v738 = vld [vmem:[#allocation7 + $0x50] sm:$0xf]
        %v739 = vld [vmem:[#allocation7 + $0x54] sm:$0xf]
        %v740 = vld [vmem:[#allocation7 + $0x58] sm:$0xf]
        %v741 = vld [vmem:[#allocation7 + $0x5c] sm:$0xf]
        %v742 = vld [vmem:[#allocation7 + $0x60] sm:$0xf]
        %v743 = vld [vmem:[#allocation7 + $0x64] sm:$0xf]
        %v744 = vld [vmem:[#allocation7 + $0x68] sm:$0xf]
        %v745 = vld [vmem:[#allocation7 + $0x6c] sm:$0xf]
        %v746 = vld [vmem:[#allocation7 + $0x70] sm:$0xf]
        %v747 = vld [vmem:[#allocation7 + $0x74] sm:$0xf]
        %v748 = vld [vmem:[#allocation7 + $0x78] sm:$0xf]
        %v749 = vld [vmem:[#allocation7 + $0x7c] sm:$0xf]
        %v750 = vld [vmem:[%s4] sm:$0x1]
        %v752 = vlaneseq
        %v753 = vshrl.u32 %v752, 7
        %v754 = vsub.s32 0, %v753
        %v755 = vrot.slane %v750, %v754
        %v789 = vunpack.c.l.b16 %v718
        %v790 = vunpack.c.l.b16 %v719
        %v791 = vunpack.c.l.b16 %v720
        %v792 = vunpack.c.l.b16 %v721
        %v793 = vunpack.c.l.b16 %v722
        %v794 = vunpack.c.l.b16 %v723
        %v795 = vunpack.c.l.b16 %v724
        %v796 = vunpack.c.l.b16 %v725
        %v797 = vunpack.c.l.b16 %v726
        %v798 = vunpack.c.l.b16 %v727
        %v799 = vunpack.c.l.b16 %v728
        %v800 = vunpack.c.l.b16 %v729
        %v801 = vunpack.c.l.b16 %v730
        %v802 = vunpack.c.l.b16 %v731
        %v803 = vunpack.c.l.b16 %v732
        %v804 = vunpack.c.l.b16 %v733
        %v805 = vunpack.c.l.b16 %v734
        %v806 = vunpack.c.l.b16 %v735
        %v807 = vunpack.c.l.b16 %v736
        %v808 = vunpack.c.l.b16 %v737
        %v809 = vunpack.c.l.b16 %v738
        %v810 = vunpack.c.l.b16 %v739
        %v811 = vunpack.c.l.b16 %v740
        %v812 = vunpack.c.l.b16 %v741
        %v813 = vunpack.c.l.b16 %v742
        %v814 = vunpack.c.l.b16 %v743
        %v815 = vunpack.c.l.b16 %v744
        %v816 = vunpack.c.l.b16 %v745
        %v817 = vunpack.c.l.b16 %v746
        %v818 = vunpack.c.l.b16 %v747
        %v819 = vunpack.c.l.b16 %v748
        %v820 = vunpack.c.l.b16 %v749
        %v821 = vpack.c.b16 %v790, %v789
        %v822 = vpack.c.b16 %v792, %v791
        %v823 = vpack.c.b16 %v794, %v793
        %v824 = vpack.c.b16 %v796, %v795
        %v825 = vpack.c.b16 %v798, %v797
        %v826 = vpack.c.b16 %v800, %v799
        %v827 = vpack.c.b16 %v802, %v801
        %v828 = vpack.c.b16 %v804, %v803
        %v829 = vpack.c.b16 %v806, %v805
        %v830 = vpack.c.b16 %v808, %v807
        %v831 = vpack.c.b16 %v810, %v809
        %v832 = vpack.c.b16 %v812, %v811
        %v833 = vpack.c.b16 %v814, %v813
        %v834 = vpack.c.b16 %v816, %v815
        %v835 = vpack.c.b16 %v818, %v817
        %v836 = vpack.c.b16 %v820, %v819
        %853 = vmatprep.subr.bf16.mxu0 0
        %854 = vmatpush1.bf16.msra.mxu0 %v821
        %855 = vmatprep.subr.bf16.mxu0 0
        %856 = vmatpush1.bf16.msra.mxu0 %v822
        %857 = vmatprep.subr.bf16.mxu0 0
        %858 = vmatpush1.bf16.msra.mxu0 %v823
        %859 = vmatprep.subr.bf16.mxu0 0
        %860 = vmatpush1.bf16.msra.mxu0 %v824
        %861 = vmatprep.subr.bf16.mxu0 0
        %862 = vmatpush1.bf16.msra.mxu0 %v825
        %863 = vmatprep.subr.bf16.mxu0 0
        %864 = vmatpush1.bf16.msra.mxu0 %v826
        %865 = vmatprep.subr.bf16.mxu0 0
        %866 = vmatpush1.bf16.msra.mxu0 %v827
        %867 = vmatprep.subr.bf16.mxu0 0
        %868 = vmatpush1.bf16.msra.mxu0 %v828
        %869 = vmatprep.subr.bf16.mxu0 0
        %870 = vmatpush1.bf16.msra.mxu0 %v829
        %871 = vmatprep.subr.bf16.mxu0 0
        %872 = vmatpush1.bf16.msra.mxu0 %v830
        %873 = vmatprep.subr.bf16.mxu0 0
        %874 = vmatpush1.bf16.msra.mxu0 %v831
        %875 = vmatprep.subr.bf16.mxu0 0
        %876 = vmatpush1.bf16.msra.mxu0 %v832
        %877 = vmatprep.subr.bf16.mxu0 0
        %878 = vmatpush1.bf16.msra.mxu0 %v833
        %879 = vmatprep.subr.bf16.mxu0 0
        %880 = vmatpush1.bf16.msra.mxu0 %v834
        %881 = vmatprep.subr.bf16.mxu0 0
        %882 = vmatpush1.bf16.msra.mxu0 %v835
        %883 = vmatprep.subr.bf16.mxu0 0
        %884 = vmatpush1.bf16.msra.mxu0 %v836
        %885 = vmatprep.mubr.bf16.mxu0 %v703
        %886 = vmatmul.mubr.bf16.gmra.mrb[0].mxu0 %v702
        %v887 = vpop.f32.mrb[0].mxu0
        %v888 = vadd.f32 %v755, %v887
        %v889 = vpop.f32.mrb[0].mxu0
        %v890 = vpop.f32.mrb[0].mxu0
        %v891 = vadd.f32 %v755, %v890
        %v892 = vpop.f32.mrb[0].mxu0
        %893 = vmatprep.mubr.bf16.mxu0 %v705
        %894 = vmatmul.mubr.bf16.gmra.mrb[0].mxu0 %v704
        %v895 = vpop.f32.mrb[0].mxu0
        %v896 = vadd.f32 %v755, %v895
        %v897 = vpop.f32.mrb[0].mxu0
        %v898 = vpop.f32.mrb[0].mxu0
        %v899 = vadd.f32 %v755, %v898
        %v900 = vpop.f32.mrb[0].mxu0
        %901 = vmatprep.mubr.bf16.mxu0 %v707
        %902 = vmatmul.mubr.bf16.gmra.mrb[0].mxu0 %v706
        %v903 = vpop.f32.mrb[0].mxu0
        %v904 = vadd.f32 %v755, %v903
        %v905 = vpop.f32.mrb[0].mxu0
        %v906 = vpop.f32.mrb[0].mxu0
        %v907 = vadd.f32 %v755, %v906
        %v908 = vpop.f32.mrb[0].mxu0
        %909 = vmatprep.mubr.bf16.mxu0 %v709
        %910 = vmatmul.mubr.bf16.gmra.mrb[0].mxu0 %v708
        %v911 = vpop.f32.mrb[0].mxu0
        %v912 = vadd.f32 %v755, %v911
        %v913 = vpop.f32.mrb[0].mxu0
        %v914 = vpop.f32.mrb[0].mxu0
        %v915 = vadd.f32 %v755, %v914
        %v916 = vpop.f32.mrb[0].mxu0
        %917 = vmatprep.mubr.bf16.mxu0 %v711
        %918 = vmatmul.mubr.bf16.gmra.mrb[0].mxu0 %v710
        %v919 = vpop.f32.mrb[0].mxu0
        %v920 = vadd.f32 %v755, %v919
        %v921 = vpop.f32.mrb[0].mxu0
        %v922 = vpop.f32.mrb[0].mxu0
        %v923 = vadd.f32 %v755, %v922
        %v924 = vpop.f32.mrb[0].mxu0
        %925 = vmatprep.mubr.bf16.mxu0 %v713
        %926 = vmatmul.mubr.bf16.gmra.mrb[0].mxu0 %v712
        %v927 = vpop.f32.mrb[0].mxu0
        %v928 = vadd.f32 %v755, %v927
        %v929 = vpop.f32.mrb[0].mxu0
        %v930 = vpop.f32.mrb[0].mxu0
        %v931 = vadd.f32 %v755, %v930
        %v932 = vpop.f32.mrb[0].mxu0
        %933 = vmatprep.mubr.bf16.mxu0 %v715
        %934 = vmatmul.mubr.bf16.gmra.mrb[0].mxu0 %v714
        %v935 = vpop.f32.mrb[0].mxu0
        %v936 = vadd.f32 %v755, %v935
        %v937 = vpop.f32.mrb[0].mxu0
        %v938 = vpop.f32.mrb[0].mxu0
        %v939 = vadd.f32 %v755, %v938
        %v940 = vpop.f32.mrb[0].mxu0
        %941 = vmatprep.mubr.bf16.mxu0 %v717
        %942 = vmatmul.mubr.bf16.gmra.mrb[0].mxu0 %v716
        %v943 = vpop.f32.mrb[0].mxu0
        %v944 = vadd.f32 %v755, %v943
        %v945 = vpop.f32.mrb[0].mxu0
        %v946 = vpop.f32.mrb[0].mxu0
        %v947 = vadd.f32 %v755, %v946
        %v948 = vpop.f32.mrb[0].mxu0
        %949 = vdwg.mxu0
        %v950 = vmax.f32 %v888, 0.0
        %v951 = vmax.f32 %v891, 0.0
        %v952 = vmax.f32 %v896, 0.0
        %v953 = vmax.f32 %v899, 0.0
        %v954 = vmax.f32 %v904, 0.0
        %v955 = vmax.f32 %v907, 0.0
        %v956 = vmax.f32 %v912, 0.0
        %v957 = vmax.f32 %v915, 0.0
        %v958 = vmax.f32 %v920, 0.0
        %v959 = vmax.f32 %v923, 0.0
        %v960 = vmax.f32 %v928, 0.0
        %v961 = vmax.f32 %v931, 0.0
        %v962 = vmax.f32 %v936, 0.0
        %v963 = vmax.f32 %v939, 0.0
        %v964 = vmax.f32 %v944, 0.0
        %v965 = vmax.f32 %v947, 0.0
        %v966 = vpack.c.bf16 %v951, %v950
        %v967 = vpack.c.bf16 %v953, %v952
        %v968 = vpack.c.bf16 %v955, %v954
        %v969 = vpack.c.bf16 %v957, %v956
        %v970 = vpack.c.bf16 %v959, %v958
        %v971 = vpack.c.bf16 %v961, %v960
        %v972 = vpack.c.bf16 %v963, %v962
        %v973 = vpack.c.bf16 %v965, %v964
        %v974 = vld [vmem:[#allocation8] sm:$0xf]
        %v975 = vld [vmem:[#allocation8 + $0x4] sm:$0xf]
        %v976 = vld [vmem:[#allocation8 + $0x8] sm:$0xf]
        %v977 = vld [vmem:[#allocation8 + $0xc] sm:$0xf]
        %v978 = vld [vmem:[#allocation8 + $0x10] sm:$0xf]
        %v979 = vld [vmem:[#allocation8 + $0x14] sm:$0xf]
        %v980 = vld [vmem:[#allocation8 + $0x18] sm:$0xf]
        %v981 = vld [vmem:[#allocation8 + $0x1c] sm:$0xf]
        %v982 = vld [vmem:[#allocation8 + $0x20] sm:$0xf]
        %v983 = vld [vmem:[#allocation8 + $0x24] sm:$0xf]
        %v984 = vld [vmem:[#allocation8 + $0x28] sm:$0xf]
        %v985 = vld [vmem:[#allocation8 + $0x2c] sm:$0xf]
        %v986 = vld [vmem:[#allocation8 + $0x30] sm:$0xf]
        %v987 = vld [vmem:[#allocation8 + $0x34] sm:$0xf]
        %v988 = vld [vmem:[#allocation8 + $0x38] sm:$0xf]
        %v989 = vld [vmem:[#allocation8 + $0x3c] sm:$0xf]
        %v990 = vpack.c.bf16 %v596, %v592
        %v991 = vpack.c.bf16 %v598, %v594
        %v992 = vpack.c.bf16 %v606, %v602
        %v993 = vpack.c.bf16 %v608, %v604
        %v994 = vpack.c.bf16 %v616, %v612
        %v995 = vpack.c.bf16 %v618, %v614
        %v996 = vpack.c.bf16 %v626, %v622
        %v997 = vpack.c.bf16 %v628, %v624
        %v998 = vpack.c.bf16 %v636, %v632
        %v999 = vpack.c.bf16 %v638, %v634
        %v1000 = vpack.c.bf16 %v646, %v642
        %v1001 = vpack.c.bf16 %v648, %v644
        %v1002 = vpack.c.bf16 %v656, %v652
        %v1003 = vpack.c.bf16 %v658, %v654
        %v1004 = vpack.c.bf16 %v666, %v662
        %v1005 = vpack.c.bf16 %v668, %v664
        %v1006 = vld [vmem:[#allocation10] sm:$0xf]
        %v1007 = vld [vmem:[#allocation10 + $0x4] sm:$0xf]
        %v1008 = vld [vmem:[#allocation10 + $0x8] sm:$0xf]
        %v1009 = vld [vmem:[#allocation10 + $0xc] sm:$0xf]
        %v1010 = vld [vmem:[#allocation10 + $0x10] sm:$0xf]
        %v1011 = vld [vmem:[#allocation10 + $0x14] sm:$0xf]
        %v1012 = vld [vmem:[#allocation10 + $0x18] sm:$0xf]
        %v1013 = vld [vmem:[#allocation10 + $0x1c] sm:$0xf]
        %v1014 = vld [vmem:[#allocation10 + $0x20] sm:$0xf]
        %v1015 = vld [vmem:[#allocation10 + $0x24] sm:$0xf]
        %v1016 = vld [vmem:[#allocation10 + $0x28] sm:$0xf]
        %v1017 = vld [vmem:[#allocation10 + $0x2c] sm:$0xf]
        %v1018 = vld [vmem:[#allocation10 + $0x30] sm:$0xf]
        %v1019 = vld [vmem:[#allocation10 + $0x34] sm:$0xf]
        %v1020 = vld [vmem:[#allocation10 + $0x38] sm:$0xf]
        %v1021 = vld [vmem:[#allocation10 + $0x3c] sm:$0xf]
        %v1022 = vld [vmem:[#allocation10 + $0x40] sm:$0xf]
        %v1023 = vld [vmem:[#allocation10 + $0x44] sm:$0xf]
        %v1024 = vld [vmem:[#allocation10 + $0x48] sm:$0xf]
        %v1025 = vld [vmem:[#allocation10 + $0x4c] sm:$0xf]
        %v1026 = vld [vmem:[#allocation10 + $0x50] sm:$0xf]
        %v1027 = vld [vmem:[#allocation10 + $0x54] sm:$0xf]
        %v1028 = vld [vmem:[#allocation10 + $0x58] sm:$0xf]
        %v1029 = vld [vmem:[#allocation10 + $0x5c] sm:$0xf]
        %v1030 = vld [vmem:[#allocation10 + $0x60] sm:$0xf]
        %v1031 = vld [vmem:[#allocation10 + $0x64] sm:$0xf]
        %v1032 = vld [vmem:[#allocation10 + $0x68] sm:$0xf]
        %v1033 = vld [vmem:[#allocation10 + $0x6c] sm:$0xf]
        %v1034 = vld [vmem:[#allocation10 + $0x70] sm:$0xf]
        %v1035 = vld [vmem:[#allocation10 + $0x74] sm:$0xf]
        %v1036 = vld [vmem:[#allocation10 + $0x78] sm:$0xf]
        %v1037 = vld [vmem:[#allocation10 + $0x7c] sm:$0xf]
        %v1070 = vunpack.c.l.b16 %v1006
        %v1071 = vunpack.c.l.b16 %v1007
        %v1072 = vunpack.c.l.b16 %v1008
        %v1073 = vunpack.c.l.b16 %v1009
        %v1074 = vunpack.c.l.b16 %v1010
        %v1075 = vunpack.c.l.b16 %v1011
        %v1076 = vunpack.c.l.b16 %v1012
        %v1077 = vunpack.c.l.b16 %v1013
        %v1078 = vunpack.c.l.b16 %v1014
        %v1079 = vunpack.c.l.b16 %v1015
        %v1080 = vunpack.c.l.b16 %v1016
        %v1081 = vunpack.c.l.b16 %v1017
        %v1082 = vunpack.c.l.b16 %v1018
        %v1083 = vunpack.c.l.b16 %v1019
        %v1084 = vunpack.c.l.b16 %v1020
        %v1085 = vunpack.c.l.b16 %v1021
        %v1086 = vunpack.c.l.b16 %v1022
        %v1087 = vunpack.c.l.b16 %v1023
        %v1088 = vunpack.c.l.b16 %v1024
        %v1089 = vunpack.c.l.b16 %v1025
        %v1090 = vunpack.c.l.b16 %v1026
        %v1091 = vunpack.c.l.b16 %v1027
        %v1092 = vunpack.c.l.b16 %v1028
        %v1093 = vunpack.c.l.b16 %v1029
        %v1094 = vunpack.c.l.b16 %v1030
        %v1095 = vunpack.c.l.b16 %v1031
        %v1096 = vunpack.c.l.b16 %v1032
        %v1097 = vunpack.c.l.b16 %v1033
        %v1098 = vunpack.c.l.b16 %v1034
        %v1099 = vunpack.c.l.b16 %v1035
        %v1100 = vunpack.c.l.b16 %v1036
        %v1101 = vunpack.c.l.b16 %v1037
        %v1102 = vpack.c.b16 %v1071, %v1070
        %v1103 = vpack.c.b16 %v1073, %v1072
        %v1104 = vpack.c.b16 %v1075, %v1074
        %v1105 = vpack.c.b16 %v1077, %v1076
        %v1106 = vpack.c.b16 %v1079, %v1078
        %v1107 = vpack.c.b16 %v1081, %v1080
        %v1108 = vpack.c.b16 %v1083, %v1082
        %v1109 = vpack.c.b16 %v1085, %v1084
        %v1110 = vpack.c.b16 %v1087, %v1086
        %v1111 = vpack.c.b16 %v1089, %v1088
        %v1112 = vpack.c.b16 %v1091, %v1090
        %v1113 = vpack.c.b16 %v1093, %v1092
        %v1114 = vpack.c.b16 %v1095, %v1094
        %v1115 = vpack.c.b16 %v1097, %v1096
        %v1116 = vpack.c.b16 %v1099, %v1098
        %v1117 = vpack.c.b16 %v1101, %v1100
        %1134 = vmatprep.subr.bf16.mxu0 0
        %1135 = vmatpush1.bf16.msra.mxu0 %v1102
        %1136 = vmatprep.subr.bf16.mxu0 0
        %1137 = vmatpush1.bf16.msra.mxu0 %v1103
        %1138 = vmatprep.subr.bf16.mxu0 0
        %1139 = vmatpush1.bf16.msra.mxu0 %v1104
        %1140 = vmatprep.subr.bf16.mxu0 0
        %1141 = vmatpush1.bf16.msra.mxu0 %v1105
        %1142 = vmatprep.subr.bf16.mxu0 0
        %1143 = vmatpush1.bf16.msra.mxu0 %v1106
        %1144 = vmatprep.subr.bf16.mxu0 0
        %1145 = vmatpush1.bf16.msra.mxu0 %v1107
        %1146 = vmatprep.subr.bf16.mxu0 0
        %1147 = vmatpush1.bf16.msra.mxu0 %v1108
        %1148 = vmatprep.subr.bf16.mxu0 0
        %1149 = vmatpush1.bf16.msra.mxu0 %v1109
        %1150 = vmatprep.subr.bf16.mxu0 0
        %1151 = vmatpush1.bf16.msra.mxu0 %v1110
        %1152 = vmatprep.subr.bf16.mxu0 0
        %1153 = vmatpush1.bf16.msra.mxu0 %v1111
        %1154 = vmatprep.subr.bf16.mxu0 0
        %1155 = vmatpush1.bf16.msra.mxu0 %v1112
        %1156 = vmatprep.subr.bf16.mxu0 0
        %1157 = vmatpush1.bf16.msra.mxu0 %v1113
        %1158 = vmatprep.subr.bf16.mxu0 0
        %1159 = vmatpush1.bf16.msra.mxu0 %v1114
        %1160 = vmatprep.subr.bf16.mxu0 0
        %1161 = vmatpush1.bf16.msra.mxu0 %v1115
        %1162 = vmatprep.subr.bf16.mxu0 0
        %1163 = vmatpush1.bf16.msra.mxu0 %v1116
        %1164 = vmatprep.subr.bf16.mxu0 0
        %1165 = vmatpush1.bf16.msra.mxu0 %v1117
        %1166 = vmatprep.mubr.bf16.mxu0 %v991
        %1167 = vmatmul.mubr.bf16.gmra.mrb[0].mxu0 %v990
        %v1168 = vpop.f32.mrb[0].mxu0
        %v1169 = vadd.f32 0.0, %v1168
        %v1170 = vpop.f32.mrb[0].mxu0
        %v1171 = vpop.f32.mrb[0].mxu0
        %v1172 = vadd.f32 0.0, %v1171
        %v1173 = vpop.f32.mrb[0].mxu0
        %1174 = vmatprep.mubr.bf16.mxu0 %v993
        %1175 = vmatmul.mubr.bf16.gmra.mrb[0].mxu0 %v992
        %v1176 = vpop.f32.mrb[0].mxu0
        %v1177 = vadd.f32 0.0, %v1176
        %v1178 = vpop.f32.mrb[0].mxu0
        %v1179 = vpop.f32.mrb[0].mxu0
        %v1180 = vadd.f32 0.0, %v1179
        %v1181 = vpop.f32.mrb[0].mxu0
        %1182 = vmatprep.mubr.bf16.mxu0 %v995
        %1183 = vmatmul.mubr.bf16.gmra.mrb[0].mxu0 %v994
        %v1184 = vpop.f32.mrb[0].mxu0
        %v1185 = vadd.f32 0.0, %v1184
        %v1186 = vpop.f32.mrb[0].mxu0
        %v1187 = vpop.f32.mrb[0].mxu0
        %v1188 = vadd.f32 0.0, %v1187
        %v1189 = vpop.f32.mrb[0].mxu0
        %1190 = vmatprep.mubr.bf16.mxu0 %v997
        %1191 = vmatmul.mubr.bf16.gmra.mrb[0].mxu0 %v996
        %v1192 = vpop.f32.mrb[0].mxu0
        %v1193 = vadd.f32 0.0, %v1192
        %v1194 = vpop.f32.mrb[0].mxu0
        %v1195 = vpop.f32.mrb[0].mxu0
        %v1196 = vadd.f32 0.0, %v1195
        %v1197 = vpop.f32.mrb[0].mxu0
        %1198 = vmatprep.mubr.bf16.mxu0 %v999
        %1199 = vmatmul.mubr.bf16.gmra.mrb[0].mxu0 %v998
        %v1200 = vpop.f32.mrb[0].mxu0
        %v1201 = vadd.f32 0.0, %v1200
        %v1202 = vpop.f32.mrb[0].mxu0
        %v1203 = vpop.f32.mrb[0].mxu0
        %v1204 = vadd.f32 0.0, %v1203
        %v1205 = vpop.f32.mrb[0].mxu0
        %1206 = vmatprep.mubr.bf16.mxu0 %v1001
        %1207 = vmatmul.mubr.bf16.gmra.mrb[0].mxu0 %v1000
        %v1208 = vpop.f32.mrb[0].mxu0
        %v1209 = vadd.f32 0.0, %v1208
        %v1210 = vpop.f32.mrb[0].mxu0
        %v1211 = vpop.f32.mrb[0].mxu0
        %v1212 = vadd.f32 0.0, %v1211
        %v1213 = vpop.f32.mrb[0].mxu0
        %1214 = vmatprep.mubr.bf16.mxu0 %v1003
        %1215 = vmatmul.mubr.bf16.gmra.mrb[0].mxu0 %v1002
        %v1216 = vpop.f32.mrb[0].mxu0
        %v1217 = vadd.f32 0.0, %v1216
        %v1218 = vpop.f32.mrb[0].mxu0
        %v1219 = vpop.f32.mrb[0].mxu0
        %v1220 = vadd.f32 0.0, %v1219
        %v1221 = vpop.f32.mrb[0].mxu0
        %1222 = vmatprep.mubr.bf16.mxu0 %v1005
        %1223 = vmatmul.mubr.bf16.gmra.mrb[0].mxu0 %v1004
        %v1224 = vpop.f32.mrb[0].mxu0
        %v1225 = vadd.f32 0.0, %v1224
        %v1226 = vpop.f32.mrb[0].mxu0
        %v1227 = vpop.f32.mrb[0].mxu0
        %v1228 = vadd.f32 0.0, %v1227
        %v1229 = vpop.f32.mrb[0].mxu0
        %1230 = vdwg.mxu0
        %v1247 = vunpack.c.l.b16 %v974
        %v1248 = vunpack.c.l.b16 %v975
        %v1249 = vunpack.c.l.b16 %v976
        %v1250 = vunpack.c.l.b16 %v977
        %v1251 = vunpack.c.l.b16 %v978
        %v1252 = vunpack.c.l.b16 %v979
        %v1253 = vunpack.c.l.b16 %v980
        %v1254 = vunpack.c.l.b16 %v981
        %v1255 = vunpack.c.l.b16 %v982
        %v1256 = vunpack.c.l.b16 %v983
        %v1257 = vunpack.c.l.b16 %v984
        %v1258 = vunpack.c.l.b16 %v985
        %v1259 = vunpack.c.l.b16 %v986
        %v1260 = vunpack.c.l.b16 %v987
        %v1261 = vunpack.c.l.b16 %v988
        %v1262 = vunpack.c.l.b16 %v989
        %v1263 = vpack.c.b16 %v1248, %v1247
        %v1264 = vpack.c.b16 %v1250, %v1249
        %v1265 = vpack.c.b16 %v1252, %v1251
        %v1266 = vpack.c.b16 %v1254, %v1253
        %v1267 = vpack.c.b16 %v1256, %v1255
        %v1268 = vpack.c.b16 %v1258, %v1257
        %v1269 = vpack.c.b16 %v1260, %v1259
        %v1270 = vpack.c.b16 %v1262, %v1261
        %1279 = vmatprep.subr.bf16.mxu0 0
        %1280 = vmatpush1.bf16.msra.mxu0 %v1263
        %1281 = vmatprep.subr.bf16.mxu0 0
        %1282 = vmatpush1.bf16.msra.mxu0 %v1264
        %1283 = vmatprep.subr.bf16.mxu0 0
        %1284 = vmatpush1.bf16.msra.mxu0 %v1265
        %1285 = vmatprep.subr.bf16.mxu0 0
        %1286 = vmatpush1.bf16.msra.mxu0 %v1266
        %1287 = vmatprep.subr.bf16.mxu0 0
        %1288 = vmatpush1.bf16.msra.mxu0 %v1267
        %1289 = vmatprep.subr.bf16.mxu0 0
        %1290 = vmatpush1.bf16.msra.mxu0 %v1268
        %1291 = vmatprep.subr.bf16.mxu0 0
        %1292 = vmatpush1.bf16.msra.mxu0 %v1269
        %1293 = vmatprep.subr.bf16.mxu0 0
        %1294 = vmatpush1.bf16.msra.mxu0 %v1270
        %1295 = vmatprep.subr.bf16.mxu0 0
        %1296 = vmatpush1.bf16.msra.mxu0 0
        %1297 = vmatprep.subr.bf16.mxu0 0
        %1298 = vmatpush1.bf16.msra.mxu0 0
        %1299 = vmatprep.subr.bf16.mxu0 0
        %1300 = vmatpush1.bf16.msra.mxu0 0
        %1301 = vmatprep.subr.bf16.mxu0 0
        %1302 = vmatpush1.bf16.msra.mxu0 0
        %1303 = vmatprep.subr.bf16.mxu0 0
        %1304 = vmatpush1.bf16.msra.mxu0 0
        %1305 = vmatprep.subr.bf16.mxu0 0
        %1306 = vmatpush1.bf16.msra.mxu0 0
        %1307 = vmatprep.subr.bf16.mxu0 0
        %1308 = vmatpush1.bf16.msra.mxu0 0
        %1309 = vmatprep.subr.bf16.mxu0 0
        %1310 = vmatpush1.bf16.msra.mxu0 0
        %1311 = vmatprep.mubr.bf16.mxu0 0
        %1312 = vmatmul.mubr.bf16.gmra.mrb[0].mxu0 %v966
        %v1313 = vpop.f32.mrb[0].mxu0
        %v1314 = vadd.f32 %v1169, %v1313
        %v1315 = vpop.f32.mrb[0].mxu0
        %v1316 = vpop.f32.mrb[0].mxu0
        %v1317 = vadd.f32 %v1172, %v1316
        %v1318 = vpop.f32.mrb[0].mxu0
        %1319 = vmatprep.mubr.bf16.mxu0 0
        %1320 = vmatmul.mubr.bf16.gmra.mrb[0].mxu0 %v967
        %v1321 = vpop.f32.mrb[0].mxu0
        %v1322 = vadd.f32 %v1177, %v1321
        %v1323 = vpop.f32.mrb[0].mxu0
        %v1324 = vpop.f32.mrb[0].mxu0
        %v1325 = vadd.f32 %v1180, %v1324
        %v1326 = vpop.f32.mrb[0].mxu0
        %1327 = vmatprep.mubr.bf16.mxu0 0
        %1328 = vmatmul.mubr.bf16.gmra.mrb[0].mxu0 %v968
        %v1329 = vpop.f32.mrb[0].mxu0
        %v1330 = vadd.f32 %v1185, %v1329
        %v1331 = vpop.f32.mrb[0].mxu0
        %v1332 = vpop.f32.mrb[0].mxu0
        %v1333 = vadd.f32 %v1188, %v1332
        %v1334 = vpop.f32.mrb[0].mxu0
        %1335 = vmatprep.mubr.bf16.mxu0 0
        %1336 = vmatmul.mubr.bf16.gmra.mrb[0].mxu0 %v969
        %v1337 = vpop.f32.mrb[0].mxu0
        %v1338 = vadd.f32 %v1193, %v1337
        %v1339 = vpop.f32.mrb[0].mxu0
        %v1340 = vpop.f32.mrb[0].mxu0
        %v1341 = vadd.f32 %v1196, %v1340
        %v1342 = vpop.f32.mrb[0].mxu0
        %1343 = vmatprep.mubr.bf16.mxu0 0
        %1344 = vmatmul.mubr.bf16.gmra.mrb[0].mxu0 %v970
        %v1345 = vpop.f32.mrb[0].mxu0
        %v1346 = vadd.f32 %v1201, %v1345
        %v1347 = vpop.f32.mrb[0].mxu0
        %v1348 = vpop.f32.mrb[0].mxu0
        %v1349 = vadd.f32 %v1204, %v1348
        %v1350 = vpop.f32.mrb[0].mxu0
        %1351 = vmatprep.mubr.bf16.mxu0 0
        %1352 = vmatmul.mubr.bf16.gmra.mrb[0].mxu0 %v971
        %v1353 = vpop.f32.mrb[0].mxu0
        %v1354 = vadd.f32 %v1209, %v1353
        %v1355 = vpop.f32.mrb[0].mxu0
        %v1356 = vpop.f32.mrb[0].mxu0
        %v1357 = vadd.f32 %v1212, %v1356
        %v1358 = vpop.f32.mrb[0].mxu0
        %1359 = vmatprep.mubr.bf16.mxu0 0
        %1360 = vmatmul.mubr.bf16.gmra.mrb[0].mxu0 %v972
        %v1361 = vpop.f32.mrb[0].mxu0
        %v1362 = vadd.f32 %v1217, %v1361
        %v1363 = vpop.f32.mrb[0].mxu0
        %v1364 = vpop.f32.mrb[0].mxu0
        %v1365 = vadd.f32 %v1220, %v1364
        %v1366 = vpop.f32.mrb[0].mxu0
        %1367 = vmatprep.mubr.bf16.mxu0 0
        %1368 = vmatmul.mubr.bf16.gmra.mrb[0].mxu0 %v973
        %v1369 = vpop.f32.mrb[0].mxu0
        %v1370 = vadd.f32 %v1225, %v1369
        %v1371 = vpop.f32.mrb[0].mxu0
        %v1372 = vpop.f32.mrb[0].mxu0
        %v1373 = vadd.f32 %v1228, %v1372
        %v1374 = vpop.f32.mrb[0].mxu0
        %1375 = vdwg.mxu0
        %v1376 = vld [vmem:[%s7] sm:$0x1]
        %v1378 = vlaneseq
        %v1379 = vshrl.u32 %v1378, 7
        %v1380 = vsub.s32 0, %v1379
        %v1381 = vrot.slane %v1376, %v1380
        %v1383 = vadd.f32 %v1314, %v1381
        %v1384 = vadd.f32 %v1317, %v1381
        %v1385 = vadd.f32 %v1322, %v1381
        %v1386 = vadd.f32 %v1325, %v1381
        %v1387 = vadd.f32 %v1330, %v1381
        %v1388 = vadd.f32 %v1333, %v1381
        %v1389 = vadd.f32 %v1338, %v1381
        %v1390 = vadd.f32 %v1341, %v1381
        %v1391 = vadd.f32 %v1346, %v1381
        %v1392 = vadd.f32 %v1349, %v1381
        %v1393 = vadd.f32 %v1354, %v1381
        %v1394 = vadd.f32 %v1357, %v1381
        %v1395 = vadd.f32 %v1362, %v1381
        %v1396 = vadd.f32 %v1365, %v1381
        %v1397 = vadd.f32 %v1370, %v1381
        %v1398 = vadd.f32 %v1373, %v1381
        %1399 = vst [vmem:[%s381] sm:$0xff] %v1383
        %1400 = vst [vmem:[%s381 + $0x8] sm:$0xff] %v1384
        %1401 = vst [vmem:[%s381 + $0x10] sm:$0xff] %v1385
        %1402 = vst [vmem:[%s381 + $0x18] sm:$0xff] %v1386
        %1403 = vst [vmem:[%s381 + $0x20] sm:$0xff] %v1387
        %1404 = vst [vmem:[%s381 + $0x28] sm:$0xff] %v1388
        %1405 = vst [vmem:[%s381 + $0x30] sm:$0xff] %v1389
        %1406 = vst [vmem:[%s381 + $0x38] sm:$0xff] %v1390
        %1407 = vst [vmem:[%s381 + $0x40] sm:$0xff] %v1391
        %1408 = vst [vmem:[%s381 + $0x48] sm:$0xff] %v1392
        %1409 = vst [vmem:[%s381 + $0x50] sm:$0xff] %v1393
        %1410 = vst [vmem:[%s381 + $0x58] sm:$0xff] %v1394
        %1411 = vst [vmem:[%s381 + $0x60] sm:$0xff] %v1395
        %1412 = vst [vmem:[%s381 + $0x68] sm:$0xff] %v1396
        %1413 = vst [vmem:[%s381 + $0x70] sm:$0xff] %v1397
        %1414 = vst [vmem:[%s381 + $0x78] sm:$0xff] %v1398
        %s1415 = sand.u32 %s208, 1
        %s1416 = scalar_lea.sflag [#allocation4], %s1415
        %s1417 = sand.u32 %s208, 1
        %s1418 = smul.addr %s1417, 128
        %s1419 = scalar_lea.vmem [#allocation11], %s1418
        // Predicated region
        $region73: #{tpu_custom_call.1} parent=51 // pred_check
          %p1420 = pneg %p218
        $region74: #{tpu_custom_call.1} parent=51 // pred_check_branch
          %1422 = sbr.rel (%p1420) target = $region76
        $region75: #{tpu_custom_call.1} parent=51 // pred_region
          %s1423 = smul.u32 16, %s27
          %s1425 = ssub.s32 2048, 2048
          %1426 = vsyncadd %s1416, %s1425
          %s1427 = smul.addr %s1423, 128
          %s1428 = scalar_lea.hbm %s8, %s1427
          %s1429 = sshll.u32 %s1419, 4
          %s1430 = int_to_ptr.vmem [resolvable:$true] %s1429
          %1435 = dma.vmem_to_hbm [thread:$0]  %s1430, 2048, %s1428, %s1416, 128, 128, 8
        $region76: #{tpu_custom_call.1} parent=51 // pred_fallthru
          _
      $region52: #{tpu_custom_call.1} parent=5 // pred_fallthru
        _
      %p1436 = scmp.le.s32.totalorder 2, %s22
      // Predicated region
      $region77: #{tpu_custom_call.1} parent=5 // pred_check
        %p1437 = pneg %p1436
      $region78: #{tpu_custom_call.1} parent=5 // pred_check_branch
        %1439 = sbr.rel (%p1437) target = $region80
      $region79: #{tpu_custom_call.1} parent=5 // pred_region
        %s1440 = ssub.s32 %s22, 2
        // Predicated region
        $region81: #{tpu_custom_call.1} parent=79 // pred_check
          %p1441 = pneg %p224
        $region82: #{tpu_custom_call.1} parent=79 // pred_check_branch
          %1443 = sbr.rel (%p1441) target = $region84
        $region83: #{tpu_custom_call.1} parent=79 // pred_region
          %s1444 = sand.u32 %s209, 1
          %s1445 = scalar_lea.sflag [#allocation4], %s1444
          %s1446 = sand.u32 %s209, 1
          %s1447 = smul.addr %s1446, 128
          %s1448 = scalar_lea.vmem [#allocation11], %s1447
          %1449 = dma.done %s1445, 2048
        $region84: #{tpu_custom_call.1} parent=79 // pred_fallthru
          _
      $region80: #{tpu_custom_call.1} parent=5 // pred_fallthru
        _
    $region6: #{tpu_custom_call.1} parent=1 // loop_footer
      %s26 = sadd.s32 1, %s22
    $region7: #{tpu_custom_call.1} parent=1 // loop_footer_branch
      %21 = sbr.rel target = $region3
    $region8: #{tpu_custom_call.1} parent=1 // loop_exit
      _
    %1450 = vsyncpa [#allocation3], 1
    %s1451 = scalar_lea.sflag [#allocation3], 1
    %1452 = vsyncpa %s1451, 1
    %1453 = vsyncpa [#allocation6], 1
    %1454 = vsyncpa [#allocation9], 1
    %1455 = vsyncpa [#allocation4], 1
    %s1456 = scalar_lea.sflag [#allocation4], 1
    %1457 = vsyncpa %s1456, 1

// kernel: tpu_custom_call.1
$region0: #{tpu_custom_call.1}
  #allocation0 [shape = 'u32[]', space=smem, size = 0x4, offset = 0x4, fixed_abs, tag = 'smem constant byte address 0x4 - core index']
  #allocation1 [shape = 'u32[144,128]{1,0:T(1,128)}', space=vmem, size = 0x12000, scoped, tag = 'internal scratch']
  %s0 = inlined_call_operand.hbm [shape: bf16[256,128], index: 0, kind: input, shape index: {}]
  %s1 = inlined_call_operand.hbm [shape: bf16[128,256], index: 1, kind: input, shape index: {}]
  %s2 = inlined_call_operand.vmem [shape: f32[1,256], index: 2, kind: input, shape index: {}]
  %s3 = inlined_call_operand.hbm [shape: bf16[256,128], index: 3, kind: input, shape index: {}]
  %s4 = inlined_call_operand.vmem [shape: f32[1,128], index: 4, kind: input, shape index: {}]
  %s5 = inlined_call_operand.hbm [shape: bf16[128,128], index: 5, kind: input, shape index: {}]
  %s6 = inlined_call_operand.hbm [shape: bf16[256,128], index: 6, kind: input, shape index: {}]
  %s7 = inlined_call_operand.vmem [shape: f32[1,128], index: 7, kind: input, shape index: {}]
  %s8 = inlined_call_operand.hbm [shape: f32[256,128], index: 8, kind: output, shape index: {}]
  %s9 = sld [smem:[#allocation0]]
  $region85: #{tpu_custom_call.1} parent=0
    _
  %s11 = ssub.s32 1, %s9
  %s12 = scalar_select 0, %s11, %s9
  $region1: #{tpu_custom_call.1} parent=0
    #allocation2 [shape = 'u8[65536]{0}', space=vmem, size = 0x10000, scoped, tag = 'input window, operand 0']
    #allocation3 [shape = 's32[2]{0}', space=sflag, size = 0x8, scoped, tag = 'scoped memory for tpu_custom_call.1']
    #allocation4 [shape = 's32[2]{0}', space=sflag, size = 0x8, scoped, tag = 'scoped memory for tpu_custom_call.1']
    #allocation5 [shape = 'u8[65536]{0}', space=vmem, size = 0x10000, scoped, tag = 'input window, operand 1, single buffered']
    #allocation6 [shape = 's32[1]{0}', space=sflag, size = 0x4, scoped, tag = 'scoped memory for tpu_custom_call.1']
    #allocation7 [shape = 'u8[65536]{0}', space=vmem, size = 0x10000, scoped, tag = 'input window, operand 3, single buffered']
    #allocation8 [shape = 'u8[32768]{0}', space=vmem, size = 0x8000, scoped, tag = 'input window, operand 5, single buffered']
    #allocation9 [shape = 's32[1]{0}', space=sflag, size = 0x4, scoped, tag = 'scoped memory for tpu_custom_call.1']
    #allocation10 [shape = 'u8[65536]{0}', space=vmem, size = 0x10000, scoped, tag = 'input window, operand 6, single buffered']
    #allocation11 [shape = 'u8[131072]{0}', space=vmem, size = 0x20000, scoped, tag = 'output window, operand 0']
    %13 = vsyncpa [#allocation3], 0
    %s14 = scalar_lea.sflag [#allocation3], 1
    %15 = vsyncpa %s14, 0
    %16 = vsyncpa [#allocation6], 0
    %17 = vsyncpa [#allocation9], 0
    %18 = vsyncpa [#allocation4], 0
    %s19 = scalar_lea.sflag [#allocation4], 1
    %20 = vsyncpa %s19, 0
    loop: start=0, step=1, limit=4
    $region2: #{tpu_custom_call.1} parent=1 // loop_pre_header
      _
    $region3: #{tpu_custom_call.1} parent=1 // loop_header
      %s22 = sphi 0, %s26
      %p23 = scmp.ge.s32.totalorder %s22, 4
      %s32 = sphi 0, %s34
      %s35 = sphi 0, %s32
      %s36 = sphi 0, %s35
      %s52 = sphi 0, %s36
      %s56 = sphi 0, %s56
      %s58 = sphi 0, %s56
      %s59 = sphi 0, %s58
      %s73 = sphi 0, %s59
      %s77 = sphi 0, %s77
      %s79 = sphi 0, %s77
      %s80 = sphi 0, %s79
      %s94 = sphi 0, %s80
      %s98 = sphi 0, %s98
      %s100 = sphi 0, %s98
      %s101 = sphi 0, %s100
      %s115 = sphi 0, %s101
      %s119 = sphi 0, %s119
      %s121 = sphi 0, %s119
      %s122 = sphi 0, %s121
      %s136 = sphi 0, %s122
      %s140 = sphi 0, %s140
      %s142 = sphi 0, %s140
      %s143 = sphi 0, %s142
      %s157 = sphi 0, %s143
      %s161 = sphi 0, %s161
      %s163 = sphi 0, %s161
      %s164 = sphi 0, %s163
      %s178 = sphi 0, %s164
      %s182 = sphi 0, %s182
      %s184 = sphi 0, %s182
      %s185 = sphi 0, %s184
      %s199 = sphi 0, %s185
      %s205 = sphi 0, %s207
      %s208 = sphi 0, %s205
      %s209 = sphi 0, %s208
      %s225 = sphi 0, %s209
    $region4: #{tpu_custom_call.1} parent=1 // loop_header_branch
      %25 = sbr.rel (%p23) target = $region8
    $region5: #{tpu_custom_call.1} parent=1 // loop_body
      %s27 = ssub.s32 %s22, 1
      %s28 = ssub.s32 %s22, 2
      %s29 = sadd.s32 %s22, 1
      %s30 = ssub.s32 %s22, %s29
      %p31 = scmp.eq.s32.totalorder %s30, 0
      %s33 = sadd.s32 %s32, 1
      %s34 = scalar_select %p31, %s32, %s33
      %p37 = pneg %p31
      %p38 = scmp.eq.s32.totalorder %s22, 1
      %p39 = por %p37, %p38
      %p40 = scmp.ne.s32.totalorder %s32, %s35
      %p41 = scmp.eq.s32.totalorder %s22, 0
      %p42 = por %p40, %p41
      %p43 = scmp.ne.s32.totalorder %s32, %s35
      %p44 = scmp.eq.s32.totalorder %s27, 1
      %p45 = por %p43, %p44
      %p46 = scmp.ne.s32.totalorder %s35, %s36
      %p47 = scmp.eq.s32.totalorder %s27, 0
      %p48 = por %p46, %p47
      %p49 = scmp.ne.s32.totalorder %s35, %s36
      %p50 = scmp.eq.s32.totalorder %s28, 1
      %p51 = por %p49, %p50
      %p53 = scmp.ne.s32.totalorder %s36, %s52
      %p54 = scmp.eq.s32.totalorder %s28, 0
      %p55 = por %p53, %p54
      %s57 = sadd.s32 %s56, 1
      %p60 = scmp.eq.s32.totalorder %s22, 1
      %p61 = scmp.ne.s32.totalorder %s56, %s58
      %p62 = scmp.eq.s32.totalorder %s22, 0
      %p63 = por %p61, %p62
      %p64 = scmp.ne.s32.totalorder %s56, %s58
      %p65 = scmp.eq.s32.totalorder %s27, 1
      %p66 = por %p64, %p65
      %p67 = scmp.ne.s32.totalorder %s58, %s59
      %p68 = scmp.eq.s32.totalorder %s27, 0
      %p69 = por %p67, %p68
      %p70 = scmp.ne.s32.totalorder %s58, %s59
      %p71 = scmp.eq.s32.totalorder %s28, 1
      %p72 = por %p70, %p71
      %p74 = scmp.ne.s32.totalorder %s59, %s73
      %p75 = scmp.eq.s32.totalorder %s28, 0
      %p76 = por %p74, %p75
      %s78 = sadd.s32 %s77, 1
      %p81 = scmp.eq.s32.totalorder %s22, 1
      %p82 = scmp.ne.s32.totalorder %s77, %s79
      %p83 = scmp.eq.s32.totalorder %s22, 0
      %p84 = por %p82, %p83
      %p85 = scmp.ne.s32.totalorder %s77, %s79
      %p86 = scmp.eq.s32.totalorder %s27, 1
      %p87 = por %p85, %p86
      %p88 = scmp.ne.s32.totalorder %s79, %s80
      %p89 = scmp.eq.s32.totalorder %s27, 0
      %p90 = por %p88, %p89
      %p91 = scmp.ne.s32.totalorder %s79, %s80
      %p92 = scmp.eq.s32.totalorder %s28, 1
      %p93 = por %p91, %p92
      %p95 = scmp.ne.s32.totalorder %s80, %s94
      %p96 = scmp.eq.s32.totalorder %s28, 0
      %p97 = por %p95, %p96
      %s99 = sadd.s32 %s98, 1
      %p102 = scmp.eq.s32.totalorder %s22, 1
      %p103 = scmp.ne.s32.totalorder %s98, %s100
      %p104 = scmp.eq.s32.totalorder %s22, 0
      %p105 = por %p103, %p104
      %p106 = scmp.ne.s32.totalorder %s98, %s100
      %p107 = scmp.eq.s32.totalorder %s27, 1
      %p108 = por %p106, %p107
      %p109 = scmp.ne.s32.totalorder %s100, %s101
      %p110 = scmp.eq.s32.totalorder %s27, 0
      %p111 = por %p109, %p110
      %p112 = scmp.ne.s32.totalorder %s100, %s101
      %p113 = scmp.eq.s32.totalorder %s28, 1
      %p114 = por %p112, %p113
      %p116 = scmp.ne.s32.totalorder %s101, %s115
      %p117 = scmp.eq.s32.totalorder %s28, 0
      %p118 = por %p116, %p117
      %s120 = sadd.s32 %s119, 1
      %p123 = scmp.eq.s32.totalorder %s22, 1
      %p124 = scmp.ne.s32.totalorder %s119, %s121
      %p125 = scmp.eq.s32.totalorder %s22, 0
      %p126 = por %p124, %p125
      %p127 = scmp.ne.s32.totalorder %s119, %s121
      %p128 = scmp.eq.s32.totalorder %s27, 1
      %p129 = por %p127, %p128
      %p130 = scmp.ne.s32.totalorder %s121, %s122
      %p131 = scmp.eq.s32.totalorder %s27, 0
      %p132 = por %p130, %p131
      %p133 = scmp.ne.s32.totalorder %s121, %s122
      %p134 = scmp.eq.s32.totalorder %s28, 1
      %p135 = por %p133, %p134
      %p137 = scmp.ne.s32.totalorder %s122, %s136
      %p138 = scmp.eq.s32.totalorder %s28, 0
      %p139 = por %p137, %p138
      %s141 = sadd.s32 %s140, 1
      %p144 = scmp.eq.s32.totalorder %s22, 1
      %p145 = scmp.ne.s32.totalorder %s140, %s142
      %p146 = scmp.eq.s32.totalorder %s22, 0
      %p147 = por %p145, %p146
      %p148 = scmp.ne.s32.totalorder %s140, %s142
      %p149 = scmp.eq.s32.totalorder %s27, 1
      %p150 = por %p148, %p149
      %p151 = scmp.ne.s32.totalorder %s142, %s143
      %p152 = scmp.eq.s32.totalorder %s27, 0
      %p153 = por %p151, %p152
      %p154 = scmp.ne.s32.totalorder %s142, %s143
      %p155 = scmp.eq.s32.totalorder %s28, 1
      %p156 = por %p154, %p155
      %p158 = scmp.ne.s32.totalorder %s143, %s157
      %p159 = scmp.eq.s32.totalorder %s28, 0
      %p160 = por %p158, %p159
      %s162 = sadd.s32 %s161, 1
      %p165 = scmp.eq.s32.totalorder %s22, 1
      %p166 = scmp.ne.s32.totalorder %s161, %s163
      %p167 = scmp.eq.s32.totalorder %s22, 0
      %p168 = por %p166, %p167
      %p169 = scmp.ne.s32.totalorder %s161, %s163
      %p170 = scmp.eq.s32.totalorder %s27, 1
      %p171 = por %p169, %p170
      %p172 = scmp.ne.s32.totalorder %s163, %s164
      %p173 = scmp.eq.s32.totalorder %s27, 0
      %p174 = por %p172, %p173
      %p175 = scmp.ne.s32.totalorder %s163, %s164
      %p176 = scmp.eq.s32.totalorder %s28, 1
      %p177 = por %p175, %p176
      %p179 = scmp.ne.s32.totalorder %s164, %s178
      %p180 = scmp.eq.s32.totalorder %s28, 0
      %p181 = por %p179, %p180
      %s183 = sadd.s32 %s182, 1
      %p186 = scmp.eq.s32.totalorder %s22, 1
      %p187 = scmp.ne.s32.totalorder %s182, %s184
      %p188 = scmp.eq.s32.totalorder %s22, 0
      %p189 = por %p187, %p188
      %p190 = scmp.ne.s32.totalorder %s182, %s184
      %p191 = scmp.eq.s32.totalorder %s27, 1
      %p192 = por %p190, %p191
      %p193 = scmp.ne.s32.totalorder %s184, %s185
      %p194 = scmp.eq.s32.totalorder %s27, 0
      %p195 = por %p193, %p194
      %p196 = scmp.ne.s32.totalorder %s184, %s185
      %p197 = scmp.eq.s32.totalorder %s28, 1
      %p198 = por %p196, %p197
      %p200 = scmp.ne.s32.totalorder %s185, %s199
      %p201 = scmp.eq.s32.totalorder %s28, 0
      %p202 = por %p200, %p201
      %s203 = ssub.s32 %s22, %s29
      %p204 = scmp.eq.s32.totalorder %s203, 0
      %s206 = sadd.s32 %s205, 1
      %s207 = scalar_select %p204, %s205, %s206
      %p210 = pneg %p204
      %p211 = scmp.eq.s32.totalorder %s22, 1
      %p212 = por %p210, %p211
      %p213 = scmp.ne.s32.totalorder %s205, %s208
      %p214 = scmp.eq.s32.totalorder %s22, 0
      %p215 = por %p213, %p214
      %p216 = scmp.ne.s32.totalorder %s205, %s208
      %p217 = scmp.eq.s32.totalorder %s27, 1
      %p218 = por %p216, %p217
      %p219 = scmp.ne.s32.totalorder %s208, %s209
      %p220 = scmp.eq.s32.totalorder %s27, 0
      %p221 = por %p219, %p220
      %p222 = scmp.ne.s32.totalorder %s208, %s209
      %p223 = scmp.eq.s32.totalorder %s28, 1
      %p224 = por %p222, %p223
      %p226 = scmp.ne.s32.totalorder %s209, %s225
      %p227 = scmp.eq.s32.totalorder %s28, 0
      %p228 = por %p226, %p227
      %p229 = scmp.le.s32.totalorder 1, %s22
      %p230 = scmp.lt.s32.totalorder %s22, 3
      %p231 = pnand %p229, %p230
      %p232 = pneg %p231
      // Predicated region
      $region9: #{tpu_custom_call.1} parent=5 // pred_check
        _
      $region10: #{tpu_custom_call.1} parent=5 // pred_check_branch
        %234 = sbr.rel (%p231) target = $region12
      $region11: #{tpu_custom_call.1} parent=5 // pred_region
        %s235 = ssub.s32 %s22, 1
        // Predicated region
        $region13: #{tpu_custom_call.1} parent=11 // pred_check
          %p236 = pneg %p69
        $region14: #{tpu_custom_call.1} parent=11 // pred_check_branch
          %238 = sbr.rel (%p236) target = $region16
        $region15: #{tpu_custom_call.1} parent=11 // pred_region
          %s240 = ssub.s32 2048, 2048
          %241 = vsyncadd [#allocation6], %s240
          %s242 = sshll.u32 [#allocation5], 4
          %s243 = int_to_ptr.vmem [resolvable:$true] %s242
          %248 = dma.hbm_to_vmem [thread:$0]  %s1, 2048, %s243, [#allocation6], 128, 128, 8
        $region16: #{tpu_custom_call.1} parent=11 // pred_fallthru
          _
        // Predicated region
        $region17: #{tpu_custom_call.1} parent=11 // pred_check
          %p249 = pneg %p90
        $region18: #{tpu_custom_call.1} parent=11 // pred_check_branch
          %251 = sbr.rel (%p249) target = $region20
        $region19: #{tpu_custom_call.1} parent=11 // pred_region
          _
        $region20: #{tpu_custom_call.1} parent=11 // pred_fallthru
          _
        // Predicated region
        $region21: #{tpu_custom_call.1} parent=11 // pred_check
          %p252 = pneg %p111
        $region22: #{tpu_custom_call.1} parent=11 // pred_check_branch
          %254 = sbr.rel (%p252) target = $region24
        $region23: #{tpu_custom_call.1} parent=11 // pred_region
          %s256 = ssub.s32 2048, 2048
          %257 = vsyncadd [#allocation6], %s256
          %s258 = sshll.u32 [#allocation7], 4
          %s259 = int_to_ptr.vmem [resolvable:$true] %s258
          %264 = dma.hbm_to_vmem [thread:$0]  %s3, 2048, %s259, [#allocation6], 64, 64, 4
        $region24: #{tpu_custom_call.1} parent=11 // pred_fallthru
          _
        // Predicated region
        $region25: #{tpu_custom_call.1} parent=11 // pred_check
          %p265 = pneg %p132
        $region26: #{tpu_custom_call.1} parent=11 // pred_check_branch
          %267 = sbr.rel (%p265) target = $region28
        $region27: #{tpu_custom_call.1} parent=11 // pred_region
          _
        $region28: #{tpu_custom_call.1} parent=11 // pred_fallthru
          _
        // Predicated region
        $region29: #{tpu_custom_call.1} parent=11 // pred_check
          %p268 = pneg %p153
        $region30: #{tpu_custom_call.1} parent=11 // pred_check_branch
          %270 = sbr.rel (%p268) target = $region32
        $region31: #{tpu_custom_call.1} parent=11 // pred_region
          %s272 = ssub.s32 1024, 1024
          %273 = vsyncadd [#allocation9], %s272
          %s274 = sshll.u32 [#allocation8], 4
          %s275 = int_to_ptr.vmem [resolvable:$true] %s274
          %280 = dma.hbm_to_vmem [thread:$0]  %s5, 1024, %s275, [#allocation9], 64, 64, 4
        $region32: #{tpu_custom_call.1} parent=11 // pred_fallthru
          _
        // Predicated region
        $region33: #{tpu_custom_call.1} parent=11 // pred_check
          %p281 = pneg %p174
        $region34: #{tpu_custom_call.1} parent=11 // pred_check_branch
          %283 = sbr.rel (%p281) target = $region36
        $region35: #{tpu_custom_call.1} parent=11 // pred_region
          %s285 = ssub.s32 2048, 2048
          %286 = vsyncadd [#allocation9], %s285
          %s287 = sshll.u32 [#allocation10], 4
          %s288 = int_to_ptr.vmem [resolvable:$true] %s287
          %293 = dma.hbm_to_vmem [thread:$0]  %s6, 2048, %s288, [#allocation9], 64, 64, 4
        $region36: #{tpu_custom_call.1} parent=11 // pred_fallthru
          _
        // Predicated region
        $region37: #{tpu_custom_call.1} parent=11 // pred_check
          %p294 = pneg %p195
        $region38: #{tpu_custom_call.1} parent=11 // pred_check_branch
          %296 = sbr.rel (%p294) target = $region40
        $region39: #{tpu_custom_call.1} parent=11 // pred_region
          _
        $region40: #{tpu_custom_call.1} parent=11 // pred_fallthru
          _
      $region12: #{tpu_custom_call.1} parent=5 // pred_fallthru
        _
      %p297 = scmp.lt.s32.totalorder %s22, 2
      // Predicated region
      $region41: #{tpu_custom_call.1} parent=5 // pred_check
        %p298 = pneg %p297
      $region42: #{tpu_custom_call.1} parent=5 // pred_check_branch
        %300 = sbr.rel (%p298) target = $region44
      $region43: #{tpu_custom_call.1} parent=5 // pred_region
        // Predicated region
        $region45: #{tpu_custom_call.1} parent=43 // pred_check
          %p301 = pneg %p42
        $region46: #{tpu_custom_call.1} parent=43 // pred_check_branch
          %303 = sbr.rel (%p301) target = $region48
        $region47: #{tpu_custom_call.1} parent=43 // pred_region
          %s304 = sand.u32 %s32, 1
          %s305 = scalar_lea.sflag [#allocation3], %s304
          %s306 = sand.u32 %s32, 1
          %s307 = smul.addr %s306, 64
          %s308 = scalar_lea.vmem [#allocation2], %s307
          %s309 = smul.u32 16, %s22
          %s311 = ssub.s32 1024, 1024
          %312 = vsyncadd %s305, %s311
          %s313 = smul.addr %s309, 64
          %s314 = scalar_lea.hbm %s0, %s313
          %s315 = sshll.u32 %s308, 4
          %s316 = int_to_ptr.vmem [resolvable:$true] %s315
          %321 = dma.hbm_to_vmem [thread:$0]  %s314, 1024, %s316, %s305, 64, 64, 4
        $region48: #{tpu_custom_call.1} parent=43 // pred_fallthru
          _
      $region44: #{tpu_custom_call.1} parent=5 // pred_fallthru
        _
      %p322 = scmp.le.s32.totalorder 1, %s22
      %p323 = scmp.lt.s32.totalorder %s22, 3
      %p324 = pnand %p322, %p323
      %p325 = pneg %p324
      // Predicated region
      $region49: #{tpu_custom_call.1} parent=5 // pred_check
        _
      $region50: #{tpu_custom_call.1} parent=5 // pred_check_branch
        %327 = sbr.rel (%p324) target = $region52
      $region51: #{tpu_custom_call.1} parent=5 // pred_region
        %s328 = ssub.s32 %s22, 1
        %s329 = sand.u32 %s35, 1
        %s330 = scalar_lea.sflag [#allocation3], %s329
        %s331 = sand.u32 %s35, 1
        %s332 = smul.addr %s331, 64
        %s333 = scalar_lea.vmem [#allocation2], %s332
        // Predicated region
        $region53: #{tpu_custom_call.1} parent=51 // pred_check
          %p334 = pneg %p48
        $region54: #{tpu_custom_call.1} parent=51 // pred_check_branch
          %336 = sbr.rel (%p334) target = $region56
        $region55: #{tpu_custom_call.1} parent=51 // pred_region
          %337 = dma.done %s330, 1024
        $region56: #{tpu_custom_call.1} parent=51 // pred_fallthru
          _
        // Predicated region
        $region57: #{tpu_custom_call.1} parent=51 // pred_check
          %p338 = pneg %p69
        $region58: #{tpu_custom_call.1} parent=51 // pred_check_branch
          %340 = sbr.rel (%p338) target = $region60
        $region59: #{tpu_custom_call.1} parent=51 // pred_region
          %341 = dma.done [#allocation6], 2048
        $region60: #{tpu_custom_call.1} parent=51 // pred_fallthru
          _
        // Predicated region
        $region61: #{tpu_custom_call.1} parent=51 // pred_check
          %p342 = pneg %p111
        $region62: #{tpu_custom_call.1} parent=51 // pred_check_branch
          %344 = sbr.rel (%p342) target = $region64
        $region63: #{tpu_custom_call.1} parent=51 // pred_region
          %345 = dma.done [#allocation6], 2048
        $region64: #{tpu_custom_call.1} parent=51 // pred_fallthru
          _
        // Predicated region
        $region65: #{tpu_custom_call.1} parent=51 // pred_check
          %p346 = pneg %p153
        $region66: #{tpu_custom_call.1} parent=51 // pred_check_branch
          %348 = sbr.rel (%p346) target = $region68
        $region67: #{tpu_custom_call.1} parent=51 // pred_region
          %349 = dma.done [#allocation9], 1024
        $region68: #{tpu_custom_call.1} parent=51 // pred_fallthru
          _
        // Predicated region
        $region69: #{tpu_custom_call.1} parent=51 // pred_check
          %p350 = pneg %p174
        $region70: #{tpu_custom_call.1} parent=51 // pred_check_branch
          %352 = sbr.rel (%p350) target = $region72
        $region71: #{tpu_custom_call.1} parent=51 // pred_region
          %353 = dma.done [#allocation9], 2048
        $region72: #{tpu_custom_call.1} parent=51 // pred_fallthru
          _
        %s354 = sand.u32 %s35, 1
        %s355 = scalar_lea.sflag [#allocation3], %s354
        %s356 = sand.u32 %s35, 1
        %s357 = smul.addr %s356, 64
        %s358 = scalar_lea.vmem [#allocation2], %s357
        %p359 = pneg %p48
        %p360 = pneg %p45
        %p361 = pneg %p69
        %p362 = pneg %p66
        %p363 = pneg %p90
        %p364 = pneg %p87
        %p365 = pneg %p111
        %p366 = pneg %p108
        %p367 = pneg %p132
        %p368 = pneg %p129
        %p369 = pneg %p153
        %p370 = pneg %p150
        %p371 = pneg %p174
        %p372 = pneg %p171
        %p373 = pneg %p195
        %p374 = pneg %p192
        %p375 = pneg %p221
        %p376 = pneg %p218
        %s377 = sand.u32 %s208, 1
        %s378 = scalar_lea.sflag [#allocation4], %s377
        %s379 = sand.u32 %s208, 1
        %s380 = smul.addr %s379, 128
        %s381 = scalar_lea.vmem [#allocation11], %s380
        %s382 = smul.u32 16, %s27
        %s383 = smul.u32 16, %s27
        %v385 = vld [vmem:[%s333] sm:$0xf]
        %v386 = vld [vmem:[%s333 + $0x4] sm:$0xf]
        %v387 = vld [vmem:[%s333 + $0x8] sm:$0xf]
        %v388 = vld [vmem:[%s333 + $0xc] sm:$0xf]
        %v389 = vld [vmem:[%s333 + $0x10] sm:$0xf]
        %v390 = vld [vmem:[%s333 + $0x14] sm:$0xf]
        %v391 = vld [vmem:[%s333 + $0x18] sm:$0xf]
        %v392 = vld [vmem:[%s333 + $0x1c] sm:$0xf]
        %v393 = vld [vmem:[%s333 + $0x20] sm:$0xf]
        %v394 = vld [vmem:[%s333 + $0x24] sm:$0xf]
        %v395 = vld [vmem:[%s333 + $0x28] sm:$0xf]
        %v396 = vld [vmem:[%s333 + $0x2c] sm:$0xf]
        %v397 = vld [vmem:[%s333 + $0x30] sm:$0xf]
        %v398 = vld [vmem:[%s333 + $0x34] sm:$0xf]
        %v399 = vld [vmem:[%s333 + $0x38] sm:$0xf]
        %v400 = vld [vmem:[%s333 + $0x3c] sm:$0xf]
        %v401 = vld [vmem:[#allocation5] sm:$0xff]
        %v402 = vld [vmem:[#allocation5 + $0x8] sm:$0xff]
        %v403 = vld [vmem:[#allocation5 + $0x10] sm:$0xff]
        %v404 = vld [vmem:[#allocation5 + $0x18] sm:$0xff]
        %v405 = vld [vmem:[#allocation5 + $0x20] sm:$0xff]
        %v406 = vld [vmem:[#allocation5 + $0x28] sm:$0xff]
        %v407 = vld [vmem:[#allocation5 + $0x30] sm:$0xff]
        %v408 = vld [vmem:[#allocation5 + $0x38] sm:$0xff]
        %v409 = vld [vmem:[#allocation5 + $0x40] sm:$0xff]
        %v410 = vld [vmem:[#allocation5 + $0x48] sm:$0xff]
        %v411 = vld [vmem:[#allocation5 + $0x50] sm:$0xff]
        %v412 = vld [vmem:[#allocation5 + $0x58] sm:$0xff]
        %v413 = vld [vmem:[#allocation5 + $0x60] sm:$0xff]
        %v414 = vld [vmem:[#allocation5 + $0x68] sm:$0xff]
        %v415 = vld [vmem:[#allocation5 + $0x70] sm:$0xff]
        %v416 = vld [vmem:[#allocation5 + $0x78] sm:$0xff]
        %v417 = vld [vmem:[%s2] sm:$0x3]
        %v419 = vlaneseq
        %v420 = vshrl.u32 %v419, 7
        %v421 = vsub.s32 0, %v420
        %v422 = vrot.slane %v417, %v421
        %v423 = vlaneseq
        %v424 = vshrl.u32 %v423, 7
        %v425 = vsub.s32 1, %v424
        %v426 = vrot.slane %v417, %v425
        %v445 = vunpack.c.l.b16 %v385
        %v446 = vunpack.c.l.b16 %v386
        %v447 = vunpack.c.l.b16 %v387
        %v448 = vunpack.c.l.b16 %v388
        %v449 = vunpack.c.l.b16 %v389
        %v450 = vunpack.c.l.b16 %v390
        %v451 = vunpack.c.l.b16 %v391
        %v452 = vunpack.c.l.b16 %v392
        %v453 = vunpack.c.l.b16 %v393
        %v454 = vunpack.c.l.b16 %v394
        %v455 = vunpack.c.l.b16 %v395
        %v456 = vunpack.c.l.b16 %v396
        %v457 = vunpack.c.l.b16 %v397
        %v458 = vunpack.c.l.b16 %v398
        %v459 = vunpack.c.l.b16 %v399
        %v460 = vunpack.c.l.b16 %v400
        %v461 = vpack.c.b16 %v446, %v445
        %v462 = vpack.c.b16 %v448, %v447
        %v463 = vpack.c.b16 %v450, %v449
        %v464 = vpack.c.b16 %v452, %v451
        %v465 = vpack.c.b16 %v454, %v453
        %v466 = vpack.c.b16 %v456, %v455
        %v467 = vpack.c.b16 %v458, %v457
        %v468 = vpack.c.b16 %v460, %v459
        %v493 = vunpack.c.l.b16 %v401
        %v494 = vunpack.c.h.b16 %v401
        %v495 = vunpack.c.l.b16 %v402
        %v496 = vunpack.c.h.b16 %v402
        %v497 = vunpack.c.l.b16 %v403
        %v498 = vunpack.c.h.b16 %v403
        %v499 = vunpack.c.l.b16 %v404
        %v500 = vunpack.c.h.b16 %v404
        %v501 = vunpack.c.l.b16 %v405
        %v502 = vunpack.c.h.b16 %v405
        %v503 = vunpack.c.l.b16 %v406
        %v504 = vunpack.c.h.b16 %v406
        %v505 = vunpack.c.l.b16 %v407
        %v506 = vunpack.c.h.b16 %v407
        %v507 = vunpack.c.l.b16 %v408
        %v508 = vunpack.c.h.b16 %v408
        %v509 = vunpack.c.l.b16 %v409
        %v510 = vunpack.c.h.b16 %v409
        %v511 = vunpack.c.l.b16 %v410
        %v512 = vunpack.c.h.b16 %v410
        %v513 = vunpack.c.l.b16 %v411
        %v514 = vunpack.c.h.b16 %v411
        %v515 = vunpack.c.l.b16 %v412
        %v516 = vunpack.c.h.b16 %v412
        %v517 = vunpack.c.l.b16 %v413
        %v518 = vunpack.c.h.b16 %v413
        %v519 = vunpack.c.l.b16 %v414
        %v520 = vunpack.c.h.b16 %v414
        %v521 = vunpack.c.l.b16 %v415
        %v522 = vunpack.c.h.b16 %v415
        %v523 = vunpack.c.l.b16 %v416
        %v524 = vunpack.c.h.b16 %v416
        %v525 = vpack.c.b16 %v495, %v493
        %v526 = vpack.c.b16 %v496, %v494
        %v527 = vpack.c.b16 %v499, %v497
        %v528 = vpack.c.b16 %v500, %v498
        %v529 = vpack.c.b16 %v503, %v501
        %v530 = vpack.c.b16 %v504, %v502
        %v531 = vpack.c.b16 %v507, %v505
        %v532 = vpack.c.b16 %v508, %v506
        %v533 = vpack.c.b16 %v511, %v509
        %v534 = vpack.c.b16 %v512, %v510
        %v535 = vpack.c.b16 %v515, %v513
        %v536 = vpack.c.b16 %v516, %v514
        %v537 = vpack.c.b16 %v519, %v517
        %v538 = vpack.c.b16 %v520, %v518
        %v539 = vpack.c.b16 %v523, %v521
        %v540 = vpack.c.b16 %v524, %v522
        %557 = vmatprep.subr.bf16.mxu0 %v526
        %558 = vmatpush1.bf16.msra.mxu0 %v525
        %559 = vmatprep.subr.bf16.mxu0 %v528
        %560 = vmatpush1.bf16.msra.mxu0 %v527
        %561 = vmatprep.subr.bf16.mxu0 %v530
        %562 = vmatpush1.bf16.msra.mxu0 %v529
        %563 = vmatprep.subr.bf16.mxu0 %v532
        %564 = vmatpush1.bf16.msra.mxu0 %v531
        %565 = vmatprep.subr.bf16.mxu0 %v534
        %566 = vmatpush1.bf16.msra.mxu0 %v533
        %567 = vmatprep.subr.bf16.mxu0 %v536
        %568 = vmatpush1.bf16.msra.mxu0 %v535
        %569 = vmatprep.subr.bf16.mxu0 %v538
        %570 = vmatpush1.bf16.msra.mxu0 %v537
        %571 = vmatprep.subr.bf16.mxu0 %v540
        %572 = vmatpush1.bf16.msra.mxu0 %v539
        %573 = vmatprep.subr.bf16.mxu0 0
        %574 = vmatpush1.bf16.msra.mxu0 0
        %575 = vmatprep.subr.bf16.mxu0 0
        %576 = vmatpush1.bf16.msra.mxu0 0
        %577 = vmatprep.subr.bf16.mxu0 0
        %578 = vmatpush1.bf16.msra.mxu0 0
        %579 = vmatprep.subr.bf16.mxu0 0
        %580 = vmatpush1.bf16.msra.mxu0 0
        %581 = vmatprep.subr.bf16.mxu0 0
        %582 = vmatpush1.bf16.msra.mxu0 0
        %583 = vmatprep.subr.bf16.mxu0 0
        %584 = vmatpush1.bf16.msra.mxu0 0
        %585 = vmatprep.subr.bf16.mxu0 0
        %586 = vmatpush1.bf16.msra.mxu0 0
        %587 = vmatprep.subr.bf16.mxu0 0
        %588 = vmatpush1.bf16.msra.mxu0 0
        %589 = vmatprep.mubr.bf16.mxu0 0
        %590 = vmatmul.mubr.bf16.gmra.mrb[0].mxu0 %v461
        %v591 = vpop.f32.mrb[0].mxu0
        %v592 = vadd.f32 %v422, %v591
        %v593 = vpop.f32.mrb[0].mxu0
        %v594 = vadd.f32 %v426, %v593
        %v595 = vpop.f32.mrb[0].mxu0
        %v596 = vadd.f32 %v422, %v595
        %v597 = vpop.f32.mrb[0].mxu0
        %v598 = vadd.f32 %v426, %v597
        %599 = vmatprep.mubr.bf16.mxu0 0
        %600 = vmatmul.mubr.bf16.gmra.mrb[0].mxu0 %v462
        %v601 = vpop.f32.mrb[0].mxu0
        %v602 = vadd.f32 %v422, %v601
        %v603 = vpop.f32.mrb[0].mxu0
        %v604 = vadd.f32 %v426, %v603
        %v605 = vpop.f32.mrb[0].mxu0
        %v606 = vadd.f32 %v422, %v605
        %v607 = vpop.f32.mrb[0].mxu0
        %v608 = vadd.f32 %v426, %v607
        %609 = vmatprep.mubr.bf16.mxu0 0
        %610 = vmatmul.mubr.bf16.gmra.mrb[0].mxu0 %v463
        %v611 = vpop.f32.mrb[0].mxu0
        %v612 = vadd.f32 %v422, %v611
        %v613 = vpop.f32.mrb[0].mxu0
        %v614 = vadd.f32 %v426, %v613
        %v615 = vpop.f32.mrb[0].mxu0
        %v616 = vadd.f32 %v422, %v615
        %v617 = vpop.f32.mrb[0].mxu0
        %v618 = vadd.f32 %v426, %v617
        %619 = vmatprep.mubr.bf16.mxu0 0
        %620 = vmatmul.mubr.bf16.gmra.mrb[0].mxu0 %v464
        %v621 = vpop.f32.mrb[0].mxu0
        %v622 = vadd.f32 %v422, %v621
        %v623 = vpop.f32.mrb[0].mxu0
        %v624 = vadd.f32 %v426, %v623
        %v625 = vpop.f32.mrb[0].mxu0
        %v626 = vadd.f32 %v422, %v625
        %v627 = vpop.f32.mrb[0].mxu0
        %v628 = vadd.f32 %v426, %v627
        %629 = vmatprep.mubr.bf16.mxu0 0
        %630 = vmatmul.mubr.bf16.gmra.mrb[0].mxu0 %v465
        %v631 = vpop.f32.mrb[0].mxu0
        %v632 = vadd.f32 %v422, %v631
        %v633 = vpop.f32.mrb[0].mxu0
        %v634 = vadd.f32 %v426, %v633
        %v635 = vpop.f32.mrb[0].mxu0
        %v636 = vadd.f32 %v422, %v635
        %v637 = vpop.f32.mrb[0].mxu0
        %v638 = vadd.f32 %v426, %v637
        %639 = vmatprep.mubr.bf16.mxu0 0
        %640 = vmatmul.mubr.bf16.gmra.mrb[0].mxu0 %v466
        %v641 = vpop.f32.mrb[0].mxu0
        %v642 = vadd.f32 %v422, %v641
        %v643 = vpop.f32.mrb[0].mxu0
        %v644 = vadd.f32 %v426, %v643
        %v645 = vpop.f32.mrb[0].mxu0
        %v646 = vadd.f32 %v422, %v645
        %v647 = vpop.f32.mrb[0].mxu0
        %v648 = vadd.f32 %v426, %v647
        %649 = vmatprep.mubr.bf16.mxu0 0
        %650 = vmatmul.mubr.bf16.gmra.mrb[0].mxu0 %v467
        %v651 = vpop.f32.mrb[0].mxu0
        %v652 = vadd.f32 %v422, %v651
        %v653 = vpop.f32.mrb[0].mxu0
        %v654 = vadd.f32 %v426, %v653
        %v655 = vpop.f32.mrb[0].mxu0
        %v656 = vadd.f32 %v422, %v655
        %v657 = vpop.f32.mrb[0].mxu0
        %v658 = vadd.f32 %v426, %v657
        %659 = vmatprep.mubr.bf16.mxu0 0
        %660 = vmatmul.mubr.bf16.gmra.mrb[0].mxu0 %v468
        %v661 = vpop.f32.mrb[0].mxu0
        %v662 = vadd.f32 %v422, %v661
        %v663 = vpop.f32.mrb[0].mxu0
        %v664 = vadd.f32 %v426, %v663
        %v665 = vpop.f32.mrb[0].mxu0
        %v666 = vadd.f32 %v422, %v665
        %v667 = vpop.f32.mrb[0].mxu0
        %v668 = vadd.f32 %v426, %v667
        %669 = vdwg.mxu0
        %v670 = vmax.f32 %v592, 0.0
        %v671 = vmax.f32 %v594, 0.0
        %v672 = vmax.f32 %v596, 0.0
        %v673 = vmax.f32 %v598, 0.0
        %v674 = vmax.f32 %v602, 0.0
        %v675 = vmax.f32 %v604, 0.0
        %v676 = vmax.f32 %v606, 0.0
        %v677 = vmax.f32 %v608, 0.0
        %v678 = vmax.f32 %v612, 0.0
        %v679 = vmax.f32 %v614, 0.0
        %v680 = vmax.f32 %v616, 0.0
        %v681 = vmax.f32 %v618, 0.0
        %v682 = vmax.f32 %v622, 0.0
        %v683 = vmax.f32 %v624, 0.0
        %v684 = vmax.f32 %v626, 0.0
        %v685 = vmax.f32 %v628, 0.0
        %v686 = vmax.f32 %v632, 0.0
        %v687 = vmax.f32 %v634, 0.0
        %v688 = vmax.f32 %v636, 0.0
        %v689 = vmax.f32 %v638, 0.0
        %v690 = vmax.f32 %v642, 0.0
        %v691 = vmax.f32 %v644, 0.0
        %v692 = vmax.f32 %v646, 0.0
        %v693 = vmax.f32 %v648, 0.0
        %v694 = vmax.f32 %v652, 0.0
        %v695 = vmax.f32 %v654, 0.0
        %v696 = vmax.f32 %v656, 0.0
        %v697 = vmax.f32 %v658, 0.0
        %v698 = vmax.f32 %v662, 0.0
        %v699 = vmax.f32 %v664, 0.0
        %v700 = vmax.f32 %v666, 0.0
        %v701 = vmax.f32 %v668, 0.0
        %v702 = vpack.c.bf16 %v672, %v670
        %v703 = vpack.c.bf16 %v673, %v671
        %v704 = vpack.c.bf16 %v676, %v674
        %v705 = vpack.c.bf16 %v677, %v675
        %v706 = vpack.c.bf16 %v680, %v678
        %v707 = vpack.c.bf16 %v681, %v679
        %v708 = vpack.c.bf16 %v684, %v682
        %v709 = vpack.c.bf16 %v685, %v683
        %v710 = vpack.c.bf16 %v688, %v686
        %v711 = vpack.c.bf16 %v689, %v687
        %v712 = vpack.c.bf16 %v692, %v690
        %v713 = vpack.c.bf16 %v693, %v691
        %v714 = vpack.c.bf16 %v696, %v694
        %v715 = vpack.c.bf16 %v697, %v695
        %v716 = vpack.c.bf16 %v700, %v698
        %v717 = vpack.c.bf16 %v701, %v699
        %v718 = vld [vmem:[#allocation7] sm:$0xf]
        %v719 = vld [vmem:[#allocation7 + $0x4] sm:$0xf]
        %v720 = vld [vmem:[#allocation7 + $0x8] sm:$0xf]
        %v721 = vld [vmem:[#allocation7 + $0xc] sm:$0xf]
        %v722 = vld [vmem:[#allocation7 + $0x10] sm:$0xf]
        %v723 = vld [vmem:[#allocation7 + $0x14] sm:$0xf]
        %v724 = vld [vmem:[#allocation7 + $0x18] sm:$0xf]
        %v725 = vld [vmem:[#allocation7 + $0x1c] sm:$0xf]
        %v726 = vld [vmem:[#allocation7 + $0x20] sm:$0xf]
        %v727 = vld [vmem:[#allocation7 + $0x24] sm:$0xf]
        %v728 = vld [vmem:[#allocation7 + $0x28] sm:$0xf]
        %v729 = vld [vmem:[#allocation7 + $0x2c] sm:$0xf]
        %v730 = vld [vmem:[#allocation7 + $0x30] sm:$0xf]
        %v731 = vld [vmem:[#allocation7 + $0x34] sm:$0xf]
        %v732 = vld [vmem:[#allocation7 + $0x38] sm:$0xf]
        %v733 = vld [vmem:[#allocation7 + $0x3c] sm:$0xf]
        %v734 = vld [vmem:[#allocation7 + $0x40] sm:$0xf]
        %v735 = vld [vmem:[#allocation7 + $0x44] sm:$0xf]
        %v736 = vld [vmem:[#allocation7 + $0x48] sm:$0xf]
        %v737 = vld [vmem:[#allocation7 + $0x4c] sm:$0xf]
        %v738 = vld [vmem:[#allocation7 + $0x50] sm:$0xf]
        %v739 = vld [vmem:[#allocation7 + $0x54] sm:$0xf]
        %v740 = vld [vmem:[#allocation7 + $0x58] sm:$0xf]
        %v741 = vld [vmem:[#allocation7 + $0x5c] sm:$0xf]
        %v742 = vld [vmem:[#allocation7 + $0x60] sm:$0xf]
        %v743 = vld [vmem:[#allocation7 + $0x64] sm:$0xf]
        %v744 = vld [vmem:[#allocation7 + $0x68] sm:$0xf]
        %v745 = vld [vmem:[#allocation7 + $0x6c] sm:$0xf]
        %v746 = vld [vmem:[#allocation7 + $0x70] sm:$0xf]
        %v747 = vld [vmem:[#allocation7 + $0x74] sm:$0xf]
        %v748 = vld [vmem:[#allocation7 + $0x78] sm:$0xf]
        %v749 = vld [vmem:[#allocation7 + $0x7c] sm:$0xf]
        %v750 = vld [vmem:[%s4] sm:$0x1]
        %v752 = vlaneseq
        %v753 = vshrl.u32 %v752, 7
        %v754 = vsub.s32 0, %v753
        %v755 = vrot.slane %v750, %v754
        %v789 = vunpack.c.l.b16 %v718
        %v790 = vunpack.c.l.b16 %v719
        %v791 = vunpack.c.l.b16 %v720
        %v792 = vunpack.c.l.b16 %v721
        %v793 = vunpack.c.l.b16 %v722
        %v794 = vunpack.c.l.b16 %v723
        %v795 = vunpack.c.l.b16 %v724
        %v796 = vunpack.c.l.b16 %v725
        %v797 = vunpack.c.l.b16 %v726
        %v798 = vunpack.c.l.b16 %v727
        %v799 = vunpack.c.l.b16 %v728
        %v800 = vunpack.c.l.b16 %v729
        %v801 = vunpack.c.l.b16 %v730
        %v802 = vunpack.c.l.b16 %v731
        %v803 = vunpack.c.l.b16 %v732
        %v804 = vunpack.c.l.b16 %v733
        %v805 = vunpack.c.l.b16 %v734
        %v806 = vunpack.c.l.b16 %v735
        %v807 = vunpack.c.l.b16 %v736
        %v808 = vunpack.c.l.b16 %v737
        %v809 = vunpack.c.l.b16 %v738
        %v810 = vunpack.c.l.b16 %v739
        %v811 = vunpack.c.l.b16 %v740
        %v812 = vunpack.c.l.b16 %v741
        %v813 = vunpack.c.l.b16 %v742
        %v814 = vunpack.c.l.b16 %v743
        %v815 = vunpack.c.l.b16 %v744
        %v816 = vunpack.c.l.b16 %v745
        %v817 = vunpack.c.l.b16 %v746
        %v818 = vunpack.c.l.b16 %v747
        %v819 = vunpack.c.l.b16 %v748
        %v820 = vunpack.c.l.b16 %v749
        %v821 = vpack.c.b16 %v790, %v789
        %v822 = vpack.c.b16 %v792, %v791
        %v823 = vpack.c.b16 %v794, %v793
        %v824 = vpack.c.b16 %v796, %v795
        %v825 = vpack.c.b16 %v798, %v797
        %v826 = vpack.c.b16 %v800, %v799
        %v827 = vpack.c.b16 %v802, %v801
        %v828 = vpack.c.b16 %v804, %v803
        %v829 = vpack.c.b16 %v806, %v805
        %v830 = vpack.c.b16 %v808, %v807
        %v831 = vpack.c.b16 %v810, %v809
        %v832 = vpack.c.b16 %v812, %v811
        %v833 = vpack.c.b16 %v814, %v813
        %v834 = vpack.c.b16 %v816, %v815
        %v835 = vpack.c.b16 %v818, %v817
        %v836 = vpack.c.b16 %v820, %v819
        %853 = vmatprep.subr.bf16.mxu0 0
        %854 = vmatpush1.bf16.msra.mxu0 %v821
        %855 = vmatprep.subr.bf16.mxu0 0
        %856 = vmatpush1.bf16.msra.mxu0 %v822
        %857 = vmatprep.subr.bf16.mxu0 0
        %858 = vmatpush1.bf16.msra.mxu0 %v823
        %859 = vmatprep.subr.bf16.mxu0 0
        %860 = vmatpush1.bf16.msra.mxu0 %v824
        %861 = vmatprep.subr.bf16.mxu0 0
        %862 = vmatpush1.bf16.msra.mxu0 %v825
        %863 = vmatprep.subr.bf16.mxu0 0
        %864 = vmatpush1.bf16.msra.mxu0 %v826
        %865 = vmatprep.subr.bf16.mxu0 0
        %866 = vmatpush1.bf16.msra.mxu0 %v827
        %867 = vmatprep.subr.bf16.mxu0 0
        %868 = vmatpush1.bf16.msra.mxu0 %v828
        %869 = vmatprep.subr.bf16.mxu0 0
        %870 = vmatpush1.bf16.msra.mxu0 %v829
        %871 = vmatprep.subr.bf16.mxu0 0
        %872 = vmatpush1.bf16.msra.mxu0 %v830
        %873 = vmatprep.subr.bf16.mxu0 0
        %874 = vmatpush1.bf16.msra.mxu0 %v831
        %875 = vmatprep.subr.bf16.mxu0 0
        %876 = vmatpush1.bf16.msra.mxu0 %v832
        %877 = vmatprep.subr.bf16.mxu0 0
        %878 = vmatpush1.bf16.msra.mxu0 %v833
        %879 = vmatprep.subr.bf16.mxu0 0
        %880 = vmatpush1.bf16.msra.mxu0 %v834
        %881 = vmatprep.subr.bf16.mxu0 0
        %882 = vmatpush1.bf16.msra.mxu0 %v835
        %883 = vmatprep.subr.bf16.mxu0 0
        %884 = vmatpush1.bf16.msra.mxu0 %v836
        %885 = vmatprep.mubr.bf16.mxu0 %v703
        %886 = vmatmul.mubr.bf16.gmra.mrb[0].mxu0 %v702
        %v887 = vpop.f32.mrb[0].mxu0
        %v888 = vadd.f32 %v755, %v887
        %v889 = vpop.f32.mrb[0].mxu0
        %v890 = vpop.f32.mrb[0].mxu0
        %v891 = vadd.f32 %v755, %v890
        %v892 = vpop.f32.mrb[0].mxu0
        %893 = vmatprep.mubr.bf16.mxu0 %v705
        %894 = vmatmul.mubr.bf16.gmra.mrb[0].mxu0 %v704
        %v895 = vpop.f32.mrb[0].mxu0
        %v896 = vadd.f32 %v755, %v895
        %v897 = vpop.f32.mrb[0].mxu0
        %v898 = vpop.f32.mrb[0].mxu0
        %v899 = vadd.f32 %v755, %v898
        %v900 = vpop.f32.mrb[0].mxu0
        %901 = vmatprep.mubr.bf16.mxu0 %v707
        %902 = vmatmul.mubr.bf16.gmra.mrb[0].mxu0 %v706
        %v903 = vpop.f32.mrb[0].mxu0
        %v904 = vadd.f32 %v755, %v903
        %v905 = vpop.f32.mrb[0].mxu0
        %v906 = vpop.f32.mrb[0].mxu0
        %v907 = vadd.f32 %v755, %v906
        %v908 = vpop.f32.mrb[0].mxu0
        %909 = vmatprep.mubr.bf16.mxu0 %v709
        %910 = vmatmul.mubr.bf16.gmra.mrb[0].mxu0 %v708
        %v911 = vpop.f32.mrb[0].mxu0
        %v912 = vadd.f32 %v755, %v911
        %v913 = vpop.f32.mrb[0].mxu0
        %v914 = vpop.f32.mrb[0].mxu0
        %v915 = vadd.f32 %v755, %v914
        %v916 = vpop.f32.mrb[0].mxu0
        %917 = vmatprep.mubr.bf16.mxu0 %v711
        %918 = vmatmul.mubr.bf16.gmra.mrb[0].mxu0 %v710
        %v919 = vpop.f32.mrb[0].mxu0
        %v920 = vadd.f32 %v755, %v919
        %v921 = vpop.f32.mrb[0].mxu0
        %v922 = vpop.f32.mrb[0].mxu0
        %v923 = vadd.f32 %v755, %v922
        %v924 = vpop.f32.mrb[0].mxu0
        %925 = vmatprep.mubr.bf16.mxu0 %v713
        %926 = vmatmul.mubr.bf16.gmra.mrb[0].mxu0 %v712
        %v927 = vpop.f32.mrb[0].mxu0
        %v928 = vadd.f32 %v755, %v927
        %v929 = vpop.f32.mrb[0].mxu0
        %v930 = vpop.f32.mrb[0].mxu0
        %v931 = vadd.f32 %v755, %v930
        %v932 = vpop.f32.mrb[0].mxu0
        %933 = vmatprep.mubr.bf16.mxu0 %v715
        %934 = vmatmul.mubr.bf16.gmra.mrb[0].mxu0 %v714
        %v935 = vpop.f32.mrb[0].mxu0
        %v936 = vadd.f32 %v755, %v935
        %v937 = vpop.f32.mrb[0].mxu0
        %v938 = vpop.f32.mrb[0].mxu0
        %v939 = vadd.f32 %v755, %v938
        %v940 = vpop.f32.mrb[0].mxu0
        %941 = vmatprep.mubr.bf16.mxu0 %v717
        %942 = vmatmul.mubr.bf16.gmra.mrb[0].mxu0 %v716
        %v943 = vpop.f32.mrb[0].mxu0
        %v944 = vadd.f32 %v755, %v943
        %v945 = vpop.f32.mrb[0].mxu0
        %v946 = vpop.f32.mrb[0].mxu0
        %v947 = vadd.f32 %v755, %v946
        %v948 = vpop.f32.mrb[0].mxu0
        %949 = vdwg.mxu0
        %v950 = vmax.f32 %v888, 0.0
        %v951 = vmax.f32 %v891, 0.0
        %v952 = vmax.f32 %v896, 0.0
        %v953 = vmax.f32 %v899, 0.0
        %v954 = vmax.f32 %v904, 0.0
        %v955 = vmax.f32 %v907, 0.0
        %v956 = vmax.f32 %v912, 0.0
        %v957 = vmax.f32 %v915, 0.0
        %v958 = vmax.f32 %v920, 0.0
        %v959 = vmax.f32 %v923, 0.0
        %v960 = vmax.f32 %v928, 0.0
        %v961 = vmax.f32 %v931, 0.0
        %v962 = vmax.f32 %v936, 0.0
        %v963 = vmax.f32 %v939, 0.0
        %v964 = vmax.f32 %v944, 0.0
        %v965 = vmax.f32 %v947, 0.0
        %v966 = vpack.c.bf16 %v951, %v950
        %v967 = vpack.c.bf16 %v953, %v952
        %v968 = vpack.c.bf16 %v955, %v954
        %v969 = vpack.c.bf16 %v957, %v956
        %v970 = vpack.c.bf16 %v959, %v958
        %v971 = vpack.c.bf16 %v961, %v960
        %v972 = vpack.c.bf16 %v963, %v962
        %v973 = vpack.c.bf16 %v965, %v964
        %v974 = vld [vmem:[#allocation8] sm:$0xf]
        %v975 = vld [vmem:[#allocation8 + $0x4] sm:$0xf]
        %v976 = vld [vmem:[#allocation8 + $0x8] sm:$0xf]
        %v977 = vld [vmem:[#allocation8 + $0xc] sm:$0xf]
        %v978 = vld [vmem:[#allocation8 + $0x10] sm:$0xf]
        %v979 = vld [vmem:[#allocation8 + $0x14] sm:$0xf]
        %v980 = vld [vmem:[#allocation8 + $0x18] sm:$0xf]
        %v981 = vld [vmem:[#allocation8 + $0x1c] sm:$0xf]
        %v982 = vld [vmem:[#allocation8 + $0x20] sm:$0xf]
        %v983 = vld [vmem:[#allocation8 + $0x24] sm:$0xf]
        %v984 = vld [vmem:[#allocation8 + $0x28] sm:$0xf]
        %v985 = vld [vmem:[#allocation8 + $0x2c] sm:$0xf]
        %v986 = vld [vmem:[#allocation8 + $0x30] sm:$0xf]
        %v987 = vld [vmem:[#allocation8 + $0x34] sm:$0xf]
        %v988 = vld [vmem:[#allocation8 + $0x38] sm:$0xf]
        %v989 = vld [vmem:[#allocation8 + $0x3c] sm:$0xf]
        %v990 = vpack.c.bf16 %v596, %v592
        %v991 = vpack.c.bf16 %v598, %v594
        %v992 = vpack.c.bf16 %v606, %v602
        %v993 = vpack.c.bf16 %v608, %v604
        %v994 = vpack.c.bf16 %v616, %v612
        %v995 = vpack.c.bf16 %v618, %v614
        %v996 = vpack.c.bf16 %v626, %v622
        %v997 = vpack.c.bf16 %v628, %v624
        %v998 = vpack.c.bf16 %v636, %v632
        %v999 = vpack.c.bf16 %v638, %v634
        %v1000 = vpack.c.bf16 %v646, %v642
        %v1001 = vpack.c.bf16 %v648, %v644
        %v1002 = vpack.c.bf16 %v656, %v652
        %v1003 = vpack.c.bf16 %v658, %v654
        %v1004 = vpack.c.bf16 %v666, %v662
        %v1005 = vpack.c.bf16 %v668, %v664
        %v1006 = vld [vmem:[#allocation10] sm:$0xf]
        %v1007 = vld [vmem:[#allocation10 + $0x4] sm:$0xf]
        %v1008 = vld [vmem:[#allocation10 + $0x8] sm:$0xf]
        %v1009 = vld [vmem:[#allocation10 + $0xc] sm:$0xf]
        %v1010 = vld [vmem:[#allocation10 + $0x10] sm:$0xf]
        %v1011 = vld [vmem:[#allocation10 + $0x14] sm:$0xf]
        %v1012 = vld [vmem:[#allocation10 + $0x18] sm:$0xf]
        %v1013 = vld [vmem:[#allocation10 + $0x1c] sm:$0xf]
        %v1014 = vld [vmem:[#allocation10 + $0x20] sm:$0xf]
        %v1015 = vld [vmem:[#allocation10 + $0x24] sm:$0xf]
        %v1016 = vld [vmem:[#allocation10 + $0x28] sm:$0xf]
        %v1017 = vld [vmem:[#allocation10 + $0x2c] sm:$0xf]
        %v1018 = vld [vmem:[#allocation10 + $0x30] sm:$0xf]
        %v1019 = vld [vmem:[#allocation10 + $0x34] sm:$0xf]
        %v1020 = vld [vmem:[#allocation10 + $0x38] sm:$0xf]
        %v1021 = vld [vmem:[#allocation10 + $0x3c] sm:$0xf]
        %v1022 = vld [vmem:[#allocation10 + $0x40] sm:$0xf]
        %v1023 = vld [vmem:[#allocation10 + $0x44] sm:$0xf]
        %v1024 = vld [vmem:[#allocation10 + $0x48] sm:$0xf]
        %v1025 = vld [vmem:[#allocation10 + $0x4c] sm:$0xf]
        %v1026 = vld [vmem:[#allocation10 + $0x50] sm:$0xf]
        %v1027 = vld [vmem:[#allocation10 + $0x54] sm:$0xf]
        %v1028 = vld [vmem:[#allocation10 + $0x58] sm:$0xf]
        %v1029 = vld [vmem:[#allocation10 + $0x5c] sm:$0xf]
        %v1030 = vld [vmem:[#allocation10 + $0x60] sm:$0xf]
        %v1031 = vld [vmem:[#allocation10 + $0x64] sm:$0xf]
        %v1032 = vld [vmem:[#allocation10 + $0x68] sm:$0xf]
        %v1033 = vld [vmem:[#allocation10 + $0x6c] sm:$0xf]
        %v1034 = vld [vmem:[#allocation10 + $0x70] sm:$0xf]
        %v1035 = vld [vmem:[#allocation10 + $0x74] sm:$0xf]
        %v1036 = vld [vmem:[#allocation10 + $0x78] sm:$0xf]
        %v1037 = vld [vmem:[#allocation10 + $0x7c] sm:$0xf]
        %v1070 = vunpack.c.l.b16 %v1006
        %v1071 = vunpack.c.l.b16 %v1007
        %v1072 = vunpack.c.l.b16 %v1008
        %v1073 = vunpack.c.l.b16 %v1009
        %v1074 = vunpack.c.l.b16 %v1010
        %v1075 = vunpack.c.l.b16 %v1011
        %v1076 = vunpack.c.l.b16 %v1012
        %v1077 = vunpack.c.l.b16 %v1013
        %v1078 = vunpack.c.l.b16 %v1014
        %v1079 = vunpack.c.l.b16 %v1015
        %v1080 = vunpack.c.l.b16 %v1016
        %v1081 = vunpack.c.l.b16 %v1017
        %v1082 = vunpack.c.l.b16 %v1018
        %v1083 = vunpack.c.l.b16 %v1019
        %v1084 = vunpack.c.l.b16 %v1020
        %v1085 = vunpack.c.l.b16 %v1021
        %v1086 = vunpack.c.l.b16 %v1022
        %v1087 = vunpack.c.l.b16 %v1023
        %v1088 = vunpack.c.l.b16 %v1024
        %v1089 = vunpack.c.l.b16 %v1025
        %v1090 = vunpack.c.l.b16 %v1026
        %v1091 = vunpack.c.l.b16 %v1027
        %v1092 = vunpack.c.l.b16 %v1028
        %v1093 = vunpack.c.l.b16 %v1029
        %v1094 = vunpack.c.l.b16 %v1030
        %v1095 = vunpack.c.l.b16 %v1031
        %v1096 = vunpack.c.l.b16 %v1032
        %v1097 = vunpack.c.l.b16 %v1033
        %v1098 = vunpack.c.l.b16 %v1034
        %v1099 = vunpack.c.l.b16 %v1035
        %v1100 = vunpack.c.l.b16 %v1036
        %v1101 = vunpack.c.l.b16 %v1037
        %v1102 = vpack.c.b16 %v1071, %v1070
        %v1103 = vpack.c.b16 %v1073, %v1072
        %v1104 = vpack.c.b16 %v1075, %v1074
        %v1105 = vpack.c.b16 %v1077, %v1076
        %v1106 = vpack.c.b16 %v1079, %v1078
        %v1107 = vpack.c.b16 %v1081, %v1080
        %v1108 = vpack.c.b16 %v1083, %v1082
        %v1109 = vpack.c.b16 %v1085, %v1084
        %v1110 = vpack.c.b16 %v1087, %v1086
        %v1111 = vpack.c.b16 %v1089, %v1088
        %v1112 = vpack.c.b16 %v1091, %v1090
        %v1113 = vpack.c.b16 %v1093, %v1092
        %v1114 = vpack.c.b16 %v1095, %v1094
        %v1115 = vpack.c.b16 %v1097, %v1096
        %v1116 = vpack.c.b16 %v1099, %v1098
        %v1117 = vpack.c.b16 %v1101, %v1100
        %1134 = vmatprep.subr.bf16.mxu0 0
        %1135 = vmatpush1.bf16.msra.mxu0 %v1102
        %1136 = vmatprep.subr.bf16.mxu0 0
        %1137 = vmatpush1.bf16.msra.mxu0 %v1103
        %1138 = vmatprep.subr.bf16.mxu0 0
        %1139 = vmatpush1.bf16.msra.mxu0 %v1104
        %1140 = vmatprep.subr.bf16.mxu0 0
        %1141 = vmatpush1.bf16.msra.mxu0 %v1105
        %1142 = vmatprep.subr.bf16.mxu0 0
        %1143 = vmatpush1.bf16.msra.mxu0 %v1106
        %1144 = vmatprep.subr.bf16.mxu0 0
        %1145 = vmatpush1.bf16.msra.mxu0 %v1107
        %1146 = vmatprep.subr.bf16.mxu0 0
        %1147 = vmatpush1.bf16.msra.mxu0 %v1108
        %1148 = vmatprep.subr.bf16.mxu0 0
        %1149 = vmatpush1.bf16.msra.mxu0 %v1109
        %1150 = vmatprep.subr.bf16.mxu0 0
        %1151 = vmatpush1.bf16.msra.mxu0 %v1110
        %1152 = vmatprep.subr.bf16.mxu0 0
        %1153 = vmatpush1.bf16.msra.mxu0 %v1111
        %1154 = vmatprep.subr.bf16.mxu0 0
        %1155 = vmatpush1.bf16.msra.mxu0 %v1112
        %1156 = vmatprep.subr.bf16.mxu0 0
        %1157 = vmatpush1.bf16.msra.mxu0 %v1113
        %1158 = vmatprep.subr.bf16.mxu0 0
        %1159 = vmatpush1.bf16.msra.mxu0 %v1114
        %1160 = vmatprep.subr.bf16.mxu0 0
        %1161 = vmatpush1.bf16.msra.mxu0 %v1115
        %1162 = vmatprep.subr.bf16.mxu0 0
        %1163 = vmatpush1.bf16.msra.mxu0 %v1116
        %1164 = vmatprep.subr.bf16.mxu0 0
        %1165 = vmatpush1.bf16.msra.mxu0 %v1117
        %1166 = vmatprep.mubr.bf16.mxu0 %v991
        %1167 = vmatmul.mubr.bf16.gmra.mrb[0].mxu0 %v990
        %v1168 = vpop.f32.mrb[0].mxu0
        %v1169 = vadd.f32 0.0, %v1168
        %v1170 = vpop.f32.mrb[0].mxu0
        %v1171 = vpop.f32.mrb[0].mxu0
        %v1172 = vadd.f32 0.0, %v1171
        %v1173 = vpop.f32.mrb[0].mxu0
        %1174 = vmatprep.mubr.bf16.mxu0 %v993
        %1175 = vmatmul.mubr.bf16.gmra.mrb[0].mxu0 %v992
        %v1176 = vpop.f32.mrb[0].mxu0
        %v1177 = vadd.f32 0.0, %v1176
        %v1178 = vpop.f32.mrb[0].mxu0
        %v1179 = vpop.f32.mrb[0].mxu0
        %v1180 = vadd.f32 0.0, %v1179
        %v1181 = vpop.f32.mrb[0].mxu0
        %1182 = vmatprep.mubr.bf16.mxu0 %v995
        %1183 = vmatmul.mubr.bf16.gmra.mrb[0].mxu0 %v994
        %v1184 = vpop.f32.mrb[0].mxu0
        %v1185 = vadd.f32 0.0, %v1184
        %v1186 = vpop.f32.mrb[0].mxu0
        %v1187 = vpop.f32.mrb[0].mxu0
        %v1188 = vadd.f32 0.0, %v1187
        %v1189 = vpop.f32.mrb[0].mxu0
        %1190 = vmatprep.mubr.bf16.mxu0 %v997
        %1191 = vmatmul.mubr.bf16.gmra.mrb[0].mxu0 %v996
        %v1192 = vpop.f32.mrb[0].mxu0
        %v1193 = vadd.f32 0.0, %v1192
        %v1194 = vpop.f32.mrb[0].mxu0
        %v1195 = vpop.f32.mrb[0].mxu0
        %v1196 = vadd.f32 0.0, %v1195
        %v1197 = vpop.f32.mrb[0].mxu0
        %1198 = vmatprep.mubr.bf16.mxu0 %v999
        %1199 = vmatmul.mubr.bf16.gmra.mrb[0].mxu0 %v998
        %v1200 = vpop.f32.mrb[0].mxu0
        %v1201 = vadd.f32 0.0, %v1200
        %v1202 = vpop.f32.mrb[0].mxu0
        %v1203 = vpop.f32.mrb[0].mxu0
        %v1204 = vadd.f32 0.0, %v1203
        %v1205 = vpop.f32.mrb[0].mxu0
        %1206 = vmatprep.mubr.bf16.mxu0 %v1001
        %1207 = vmatmul.mubr.bf16.gmra.mrb[0].mxu0 %v1000
        %v1208 = vpop.f32.mrb[0].mxu0
        %v1209 = vadd.f32 0.0, %v1208
        %v1210 = vpop.f32.mrb[0].mxu0
        %v1211 = vpop.f32.mrb[0].mxu0
        %v1212 = vadd.f32 0.0, %v1211
        %v1213 = vpop.f32.mrb[0].mxu0
        %1214 = vmatprep.mubr.bf16.mxu0 %v1003
        %1215 = vmatmul.mubr.bf16.gmra.mrb[0].mxu0 %v1002
        %v1216 = vpop.f32.mrb[0].mxu0
        %v1217 = vadd.f32 0.0, %v1216
        %v1218 = vpop.f32.mrb[0].mxu0
        %v1219 = vpop.f32.mrb[0].mxu0
        %v1220 = vadd.f32 0.0, %v1219
        %v1221 = vpop.f32.mrb[0].mxu0
        %1222 = vmatprep.mubr.bf16.mxu0 %v1005
        %1223 = vmatmul.mubr.bf16.gmra.mrb[0].mxu0 %v1004
        %v1224 = vpop.f32.mrb[0].mxu0
        %v1225 = vadd.f32 0.0, %v1224
        %v1226 = vpop.f32.mrb[0].mxu0
        %v1227 = vpop.f32.mrb[0].mxu0
        %v1228 = vadd.f32 0.0, %v1227
        %v1229 = vpop.f32.mrb[0].mxu0
        %1230 = vdwg.mxu0
        %v1247 = vunpack.c.l.b16 %v974
        %v1248 = vunpack.c.l.b16 %v975
        %v1249 = vunpack.c.l.b16 %v976
        %v1250 = vunpack.c.l.b16 %v977
        %v1251 = vunpack.c.l.b16 %v978
        %v1252 = vunpack.c.l.b16 %v979
        %v1253 = vunpack.c.l.b16 %v980
        %v1254 = vunpack.c.l.b16 %v981
        %v1255 = vunpack.c.l.b16 %v982
        %v1256 = vunpack.c.l.b16 %v983
        %v1257 = vunpack.c.l.b16 %v984
        %v1258 = vunpack.c.l.b16 %v985
        %v1259 = vunpack.c.l.b16 %v986
        %v1260 = vunpack.c.l.b16 %v987
        %v1261 = vunpack.c.l.b16 %v988
        %v1262 = vunpack.c.l.b16 %v989
        %v1263 = vpack.c.b16 %v1248, %v1247
        %v1264 = vpack.c.b16 %v1250, %v1249
        %v1265 = vpack.c.b16 %v1252, %v1251
        %v1266 = vpack.c.b16 %v1254, %v1253
        %v1267 = vpack.c.b16 %v1256, %v1255
        %v1268 = vpack.c.b16 %v1258, %v1257
        %v1269 = vpack.c.b16 %v1260, %v1259
        %v1270 = vpack.c.b16 %v1262, %v1261
        %1279 = vmatprep.subr.bf16.mxu0 0
        %1280 = vmatpush1.bf16.msra.mxu0 %v1263
        %1281 = vmatprep.subr.bf16.mxu0 0
        %1282 = vmatpush1.bf16.msra.mxu0 %v1264
        %1283 = vmatprep.subr.bf16.mxu0 0
        %1284 = vmatpush1.bf16.msra.mxu0 %v1265
        %1285 = vmatprep.subr.bf16.mxu0 0
        %1286 = vmatpush1.bf16.msra.mxu0 %v1266
        %1287 = vmatprep.subr.bf16.mxu0 0
        %1288 = vmatpush1.bf16.msra.mxu0 %v1267
        %1289 = vmatprep.subr.bf16.mxu0 0
        %1290 = vmatpush1.bf16.msra.mxu0 %v1268
        %1291 = vmatprep.subr.bf16.mxu0 0
        %1292 = vmatpush1.bf16.msra.mxu0 %v1269
        %1293 = vmatprep.subr.bf16.mxu0 0
        %1294 = vmatpush1.bf16.msra.mxu0 %v1270
        %1295 = vmatprep.subr.bf16.mxu0 0
        %1296 = vmatpush1.bf16.msra.mxu0 0
        %1297 = vmatprep.subr.bf16.mxu0 0
        %1298 = vmatpush1.bf16.msra.mxu0 0
        %1299 = vmatprep.subr.bf16.mxu0 0
        %1300 = vmatpush1.bf16.msra.mxu0 0
        %1301 = vmatprep.subr.bf16.mxu0 0
        %1302 = vmatpush1.bf16.msra.mxu0 0
        %1303 = vmatprep.subr.bf16.mxu0 0
        %1304 = vmatpush1.bf16.msra.mxu0 0
        %1305 = vmatprep.subr.bf16.mxu0 0
        %1306 = vmatpush1.bf16.msra.mxu0 0
        %1307 = vmatprep.subr.bf16.mxu0 0
        %1308 = vmatpush1.bf16.msra.mxu0 0
        %1309 = vmatprep.subr.bf16.mxu0 0
        %1310 = vmatpush1.bf16.msra.mxu0 0
        %1311 = vmatprep.mubr.bf16.mxu0 0
        %1312 = vmatmul.mubr.bf16.gmra.mrb[0].mxu0 %v966
        %v1313 = vpop.f32.mrb[0].mxu0
        %v1314 = vadd.f32 %v1169, %v1313
        %v1315 = vpop.f32.mrb[0].mxu0
        %v1316 = vpop.f32.mrb[0].mxu0
        %v1317 = vadd.f32 %v1172, %v1316
        %v1318 = vpop.f32.mrb[0].mxu0
        %1319 = vmatprep.mubr.bf16.mxu0 0
        %1320 = vmatmul.mubr.bf16.gmra.mrb[0].mxu0 %v967
        %v1321 = vpop.f32.mrb[0].mxu0
        %v1322 = vadd.f32 %v1177, %v1321
        %v1323 = vpop.f32.mrb[0].mxu0
        %v1324 = vpop.f32.mrb[0].mxu0
        %v1325 = vadd.f32 %v1180, %v1324
        %v1326 = vpop.f32.mrb[0].mxu0
        %1327 = vmatprep.mubr.bf16.mxu0 0
        %1328 = vmatmul.mubr.bf16.gmra.mrb[0].mxu0 %v968
        %v1329 = vpop.f32.mrb[0].mxu0
        %v1330 = vadd.f32 %v1185, %v1329
        %v1331 = vpop.f32.mrb[0].mxu0
        %v1332 = vpop.f32.mrb[0].mxu0
        %v1333 = vadd.f32 %v1188, %v1332
        %v1334 = vpop.f32.mrb[0].mxu0
        %1335 = vmatprep.mubr.bf16.mxu0 0
        %1336 = vmatmul.mubr.bf16.gmra.mrb[0].mxu0 %v969
        %v1337 = vpop.f32.mrb[0].mxu0
        %v1338 = vadd.f32 %v1193, %v1337
        %v1339 = vpop.f32.mrb[0].mxu0
        %v1340 = vpop.f32.mrb[0].mxu0
        %v1341 = vadd.f32 %v1196, %v1340
        %v1342 = vpop.f32.mrb[0].mxu0
        %1343 = vmatprep.mubr.bf16.mxu0 0
        %1344 = vmatmul.mubr.bf16.gmra.mrb[0].mxu0 %v970
        %v1345 = vpop.f32.mrb[0].mxu0
        %v1346 = vadd.f32 %v1201, %v1345
        %v1347 = vpop.f32.mrb[0].mxu0
        %v1348 = vpop.f32.mrb[0].mxu0
        %v1349 = vadd.f32 %v1204, %v1348
        %v1350 = vpop.f32.mrb[0].mxu0
        %1351 = vmatprep.mubr.bf16.mxu0 0
        %1352 = vmatmul.mubr.bf16.gmra.mrb[0].mxu0 %v971
        %v1353 = vpop.f32.mrb[0].mxu0
        %v1354 = vadd.f32 %v1209, %v1353
        %v1355 = vpop.f32.mrb[0].mxu0
        %v1356 = vpop.f32.mrb[0].mxu0
        %v1357 = vadd.f32 %v1212, %v1356
        %v1358 = vpop.f32.mrb[0].mxu0
        %1359 = vmatprep.mubr.bf16.mxu0 0
        %1360 = vmatmul.mubr.bf16.gmra.mrb[0].mxu0 %v972
        %v1361 = vpop.f32.mrb[0].mxu0
        %v1362 = vadd.f32 %v1217, %v1361
        %v1363 = vpop.f32.mrb[0].mxu0
        %v1364 = vpop.f32.mrb[0].mxu0
        %v1365 = vadd.f32 %v1220, %v1364
        %v1366 = vpop.f32.mrb[0].mxu0
        %1367 = vmatprep.mubr.bf16.mxu0 0
        %1368 = vmatmul.mubr.bf16.gmra.mrb[0].mxu0 %v973
        %v1369 = vpop.f32.mrb[0].mxu0
        %v1370 = vadd.f32 %v1225, %v1369
        %v1371 = vpop.f32.mrb[0].mxu0
        %v1372 = vpop.f32.mrb[0].mxu0
        %v1373 = vadd.f32 %v1228, %v1372
        %v1374 = vpop.f32.mrb[0].mxu0
        %1375 = vdwg.mxu0
        %v1376 = vld [vmem:[%s7] sm:$0x1]
        %v1378 = vlaneseq
        %v1379 = vshrl.u32 %v1378, 7
        %v1380 = vsub.s32 0, %v1379
        %v1381 = vrot.slane %v1376, %v1380
        %v1383 = vadd.f32 %v1314, %v1381
        %v1384 = vadd.f32 %v1317, %v1381
        %v1385 = vadd.f32 %v1322, %v1381
        %v1386 = vadd.f32 %v1325, %v1381
        %v1387 = vadd.f32 %v1330, %v1381
        %v1388 = vadd.f32 %v1333, %v1381
        %v1389 = vadd.f32 %v1338, %v1381
        %v1390 = vadd.f32 %v1341, %v1381
        %v1391 = vadd.f32 %v1346, %v1381
        %v1392 = vadd.f32 %v1349, %v1381
        %v1393 = vadd.f32 %v1354, %v1381
        %v1394 = vadd.f32 %v1357, %v1381
        %v1395 = vadd.f32 %v1362, %v1381
        %v1396 = vadd.f32 %v1365, %v1381
        %v1397 = vadd.f32 %v1370, %v1381
        %v1398 = vadd.f32 %v1373, %v1381
        %1399 = vst [vmem:[%s381] sm:$0xff] %v1383
        %1400 = vst [vmem:[%s381 + $0x8] sm:$0xff] %v1384
        %1401 = vst [vmem:[%s381 + $0x10] sm:$0xff] %v1385
        %1402 = vst [vmem:[%s381 + $0x18] sm:$0xff] %v1386
        %1403 = vst [vmem:[%s381 + $0x20] sm:$0xff] %v1387
        %1404 = vst [vmem:[%s381 + $0x28] sm:$0xff] %v1388
        %1405 = vst [vmem:[%s381 + $0x30] sm:$0xff] %v1389
        %1406 = vst [vmem:[%s381 + $0x38] sm:$0xff] %v1390
        %1407 = vst [vmem:[%s381 + $0x40] sm:$0xff] %v1391
        %1408 = vst [vmem:[%s381 + $0x48] sm:$0xff] %v1392
        %1409 = vst [vmem:[%s381 + $0x50] sm:$0xff] %v1393
        %1410 = vst [vmem:[%s381 + $0x58] sm:$0xff] %v1394
        %1411 = vst [vmem:[%s381 + $0x60] sm:$0xff] %v1395
        %1412 = vst [vmem:[%s381 + $0x68] sm:$0xff] %v1396
        %1413 = vst [vmem:[%s381 + $0x70] sm:$0xff] %v1397
        %1414 = vst [vmem:[%s381 + $0x78] sm:$0xff] %v1398
        %s1415 = sand.u32 %s208, 1
        %s1416 = scalar_lea.sflag [#allocation4], %s1415
        %s1417 = sand.u32 %s208, 1
        %s1418 = smul.addr %s1417, 128
        %s1419 = scalar_lea.vmem [#allocation11], %s1418
        // Predicated region
        $region73: #{tpu_custom_call.1} parent=51 // pred_check
          %p1420 = pneg %p218
        $region74: #{tpu_custom_call.1} parent=51 // pred_check_branch
          %1422 = sbr.rel (%p1420) target = $region76
        $region75: #{tpu_custom_call.1} parent=51 // pred_region
          %s1423 = smul.u32 16, %s27
          %s1425 = ssub.s32 2048, 2048
          %1426 = vsyncadd %s1416, %s1425
          %s1427 = smul.addr %s1423, 128
          %s1428 = scalar_lea.hbm %s8, %s1427
          %s1429 = sshll.u32 %s1419, 4
          %s1430 = int_to_ptr.vmem [resolvable:$true] %s1429
          %1435 = dma.vmem_to_hbm [thread:$0]  %s1430, 2048, %s1428, %s1416, 128, 128, 8
        $region76: #{tpu_custom_call.1} parent=51 // pred_fallthru
          _
      $region52: #{tpu_custom_call.1} parent=5 // pred_fallthru
        _
      %p1436 = scmp.le.s32.totalorder 2, %s22
      // Predicated region
      $region77: #{tpu_custom_call.1} parent=5 // pred_check
        %p1437 = pneg %p1436
      $region78: #{tpu_custom_call.1} parent=5 // pred_check_branch
        %1439 = sbr.rel (%p1437) target = $region80
      $region79: #{tpu_custom_call.1} parent=5 // pred_region
        %s1440 = ssub.s32 %s22, 2
        // Predicated region
        $region81: #{tpu_custom_call.1} parent=79 // pred_check
          %p1441 = pneg %p224
        $region82: #{tpu_custom_call.1} parent=79 // pred_check_branch
          %1443 = sbr.rel (%p1441) target = $region84
        $region83: #{tpu_custom_call.1} parent=79 // pred_region
          %s1444 = sand.u32 %s209, 1
          %s1445 = scalar_lea.sflag [#allocation4], %s1444
          %s1446 = sand.u32 %s209, 1
          %s1447 = smul.addr %s1446, 128
          %s1448 = scalar_lea.vmem [#allocation11], %s1447
          %1449 = dma.done %s1445, 2048
        $region84: #{tpu_custom_call.1} parent=79 // pred_fallthru
          _
      $region80: #{tpu_custom_call.1} parent=5 // pred_fallthru
        _
    $region6: #{tpu_custom_call.1} parent=1 // loop_footer
      %s26 = sadd.s32 1, %s22
    $region7: #{tpu_custom_call.1} parent=1 // loop_footer_branch
      %21 = sbr.rel target = $region3
    $region8: #{tpu_custom_call.1} parent=1 // loop_exit
      _
    %1450 = vsyncpa [#allocation3], 1
    %s1451 = scalar_lea.sflag [#allocation3], 1
    %1452 = vsyncpa %s1451, 1
    %1453 = vsyncpa [#allocation6], 1
    %1454 = vsyncpa [#allocation9], 1
    %1455 = vsyncpa [#allocation4], 1
    %s1456 = scalar_lea.sflag [#allocation4], 1
    %1457 = vsyncpa %s1456, 1

</llo_original>
